<compile_context>
chip_gen: v7x
topology: tpu7x:2x2x1
jax: 0.10.0
libtpu: 0.0.40
codegen_flags: <defaults>
</compile_context>

<pallas_src>
import functools
import math

import jax
import jax.numpy as jnp
from jax import lax
from jax.experimental import pallas as pl
from jax.experimental.pallas import tpu as pltpu

_INV_SQRT2 = 1.0 / math.sqrt(2.0)


def _round_up(x, m):
    return (x + m - 1) // m * m


def _sublane(dtype):
    # rows per sublane-packed vreg slice: 8 for f32, 16 for bf16, 32 for int8/fp8
    return max(8, 32 // jnp.dtype(dtype).itemsize)


def _vmem_budget():
    """Generation-aware (budget, scoped-limit) in bytes: ~5/8 and ~3/4 of VMEM."""
    phys = 64 * 1024 * 1024                      # conservative (v7x per-core)
    try:
        info = pltpu.get_tpu_info()
        phys = int(getattr(info, "vmem_capacity_bytes", phys) or phys)
    except Exception:
        pass
    return (phys * 5) // 8, (phys * 3) // 4


def _pick_tiles(n_rows, dim_in, dim_out, dtype, vmem_budget,
                row_tile=None, n_tile=None, k_tile=None):
    """Choose (row, out-col, reduction) tiles that fit the VMEM budget."""
    itemsize = jnp.dtype(dtype).itemsize
    sub = _sublane(dtype)
    k_full = _round_up(dim_in, 128)
    auto_m, auto_n, auto_k = row_tile is None, n_tile is None, k_tile is None

    m_cap = 1024 if vmem_budget >= 64 * 1024 * 1024 else 512
    tm = row_tile if row_tile is not None else min(m_cap, _round_up(max(n_rows, 1), sub))
    tn = n_tile if n_tile is not None else min(512, _round_up(dim_out, 128))
    tk = k_tile if k_tile is not None else k_full          # whole-K by default
    tm = _round_up(max(tm, sub), sub)
    tn = _round_up(max(tn, 128), 128)
    tk = _round_up(max(tk, 128), 128)

    def footprint(tm_, tn_, tk_):
        # double-buffered DMA windows (x, two weight slabs, biases, output)
        # plus resident f32 accumulators only when K is tiled.
        ins = 2 * (tm_ * tk_ + 2 * tk_ * tn_) * itemsize + 2 * 2 * tn_ * 4
        outs = 2 * tm_ * tn_ * itemsize
        accs = 0 if tk_ >= k_full else 2 * tm_ * tn_ * 4
        return ins + outs + accs

    # Shrink only auto-chosen dims until the working set fits the budget.
    # Keep the output tile lane-dense (tn) as long as possible: drop rows
    # first, then the reduction slab, and tn only as a last resort.
    while auto_m and tm > sub and footprint(tm, tn, tk) > vmem_budget:
        tm = _round_up(max(sub, tm // 2), sub)
    while auto_k and tk > 128 and footprint(tm, tn, tk) > vmem_budget:
        tk = max(128, _round_up(tk // 2, 128))
    while auto_n and tn > 128 and footprint(tm, tn, tk) > vmem_budget:
        tn = max(128, _round_up(tn // 2, 128))

    # v7x has 2 TensorCores fed by the "parallel" grid axes: make sure the
    # parallel grid has >= 2 steps whenever the problem is big enough.
    def parallel_steps(tm_, tn_):
        m_steps = _round_up(max(n_rows, 1), tm_) // tm_
        n_steps = _round_up(dim_out, tn_) // tn_
        return m_steps * n_steps

    while (auto_n and tn > 128 and parallel_steps(tm, tn) < 2
           and _round_up(dim_out, 128) >= 256):
        tn = max(128, (tn // 2) // 128 * 128)
    while (auto_m and tm > sub and parallel_steps(tm, tn) < 2
           and _round_up(n_rows, sub) >= 2 * sub):
        tm = _round_up(max(sub, tm // 2), sub)

    return tm, tn, tk


def _geglu_kernel_whole_k(x_ref, wx_ref, wg_ref, bx_ref, bg_ref, o_ref, *, precision):
    """Whole-K resident: single dot per half, no accumulators, 2-D grid."""
    x = x_ref[...]
    h = jnp.dot(x, wx_ref[...], preferred_element_type=jnp.float32, precision=precision)
    g = jnp.dot(x, wg_ref[...], preferred_element_type=jnp.float32, precision=precision)
    h = h + bx_ref[...].astype(jnp.float32)
    g = g + bg_ref[...].astype(jnp.float32)
    # exact GELU (matches torch F.gelu default, approximate='none')
    o_ref[...] = (h * (0.5 * g * (1.0 + lax.erf(g * _INV_SQRT2)))).astype(o_ref.dtype)


def _geglu_kernel_ktiled(x_ref, wx_ref, wg_ref, bx_ref, bg_ref, o_ref,
                         acc_h, acc_g, *, precision):
    """K-tiled: f32 VMEM accumulators with pl.when init/finalize, 3-D grid."""
    k = pl.program_id(2)

    @pl.when(k == 0)
    def _init():
        acc_h[...] = jnp.zeros_like(acc_h)
        acc_g[...] = jnp.zeros_like(acc_g)

    x = x_ref[...]
    acc_h[...] += jnp.dot(x, wx_ref[...], preferred_element_type=jnp.float32,
                          precision=precision)
    acc_g[...] += jnp.dot(x, wg_ref[...], preferred_element_type=jnp.float32,
                          precision=precision)

    @pl.when(k == pl.num_programs(2) - 1)
    def _finalize():
        h = acc_h[...] + bx_ref[...].astype(jnp.float32)
        g = acc_g[...] + bg_ref[...].astype(jnp.float32)
        o_ref[...] = (h * (0.5 * g * (1.0 + lax.erf(g * _INV_SQRT2)))).astype(o_ref.dtype)


def geglu(x, w, b, *, row_tile=None, n_tile=None, k_tile=None):
    """GEGLU: (x @ w + b) split in half along last dim; h * gelu(gate).

    x: (..., dim_in); w: (dim_in, 2*dim_out) [pre-transposed vs torch Linear];
    b: (2*dim_out,).
    """
    *lead, dim_in = x.shape
    assert w.shape[0] == dim_in and w.shape[1] % 2 == 0
    dim_out = w.shape[1] // 2

    x2d = x.reshape(-1, dim_in)
    n_rows = x2d.shape[0]
    dtype = x.dtype
    itemsize = jnp.dtype(dtype).itemsize

    vmem_budget, vmem_limit = _vmem_budget()
    tm, tn, tk = _pick_tiles(n_rows, dim_in, dim_out, dtype, vmem_budget,
                             row_tile, n_tile, k_tile)

    M = _round_up(max(n_rows, 1), tm)
    N = _round_up(dim_out, tn)
    K = _round_up(dim_in, tk)
    whole_k = tk >= K
    if whole_k:
        tk = K

    # ---- inputs: pad only when actually needed --------------------------------
    if M == n_rows and K == dim_in:
        x_p = x2d
    else:
        x_p = jnp.zeros((M, K), dtype).at[:n_rows, :dim_in].set(x2d)

    # Avoid splitting / copying w when the gate half can be addressed by a
    # block-column offset in its index_map (needs no K/N padding).
    split_w = not (K == dim_in and N == dim_out)
    if split_w:
        wx_in = jnp.zeros((K, N), w.dtype).at[:dim_in, :dim_out].set(w[:, :dim_out])
        wg_in = jnp.zeros((K, N), w.dtype).at[:dim_in, :dim_out].set(w[:, dim_out:])
        gate_off = 0                       # both padded halves start at block col 0
    else:
        wx_in = w                          # h half:    cols [0, dim_out)
        wg_in = w                          # gate half: cols [dim_out, 2*dim_out)
        gate_off = dim_out // tn           # static block-column offset

    if N == dim_out:
        bx_in = b[:dim_out].astype(jnp.float32).reshape(1, dim_out)
        bg_in = b[dim_out:].astype(jnp.float32).reshape(1, dim_out)
    else:
        bx_in = jnp.zeros((1, N), jnp.float32).at[0, :dim_out].set(
            b[:dim_out].astype(jnp.float32))
        bg_in = jnp.zeros((1, N), jnp.float32).at[0, :dim_out].set(
            b[dim_out:].astype(jnp.float32))

    # Exact-ish f32 matmul for f32 inputs (matches the HIGHEST-precision ref);
    # native single-pass MXU for bf16 production inputs.
    precision = (lax.Precision.HIGHEST if dtype == jnp.float32
                 else lax.Precision.DEFAULT)

    cost = pl.CostEstimate(
        flops=2 * 2 * M * N * K,
        transcendentals=M * N,
        bytes_accessed=(M * K + 2 * K * N + M * N) * itemsize + 2 * N * 4)

    if whole_k:
        grid = (M // tm, N // tn)
        in_specs = [
            pl.BlockSpec((tm, tk), lambda i, j: (i, 0)),                     # x
            pl.BlockSpec((tk, tn), lambda i, j: (0, j)),                     # w (h)
            pl.BlockSpec((tk, tn), lambda i, j, off=gate_off: (0, j + off)),  # w (gate)
            pl.BlockSpec((1, tn), lambda i, j: (0, j)),                      # b (h)
            pl.BlockSpec((1, tn), lambda i, j: (0, j)),                      # b (gate)
        ]
        out_specs = pl.BlockSpec((tm, tn), lambda i, j: (i, j))
        scratch = []
        kernel = functools.partial(_geglu_kernel_whole_k, precision=precision)
        dims = ("parallel", "parallel")
    else:
        grid = (M // tm, N // tn, K // tk)
        in_specs = [
            pl.BlockSpec((tm, tk), lambda i, j, k: (i, k)),                     # x
            pl.BlockSpec((tk, tn), lambda i, j, k: (k, j)),                     # w (h)
            pl.BlockSpec((tk, tn), lambda i, j, k, off=gate_off: (k, j + off)),  # w (gate)
            pl.BlockSpec((1, tn), lambda i, j, k: (0, j)),                      # b (h)
            pl.BlockSpec((1, tn), lambda i, j, k: (0, j)),                      # b (gate)
        ]
        out_specs = pl.BlockSpec((tm, tn), lambda i, j, k: (i, j))
        scratch = [pltpu.VMEM((tm, tn), jnp.float32),
                   pltpu.VMEM((tm, tn), jnp.float32)]
        kernel = functools.partial(_geglu_kernel_ktiled, precision=precision)
        dims = ("parallel", "parallel", "arbitrary")

    out = pl.pallas_call(
        kernel,
        out_shape=jax.ShapeDtypeStruct((M, N), dtype),
        grid_spec=pltpu.PrefetchScalarGridSpec(
            num_scalar_prefetch=0,
            grid=grid,
            in_specs=in_specs,
            out_specs=out_specs,
            scratch_shapes=scratch),
        compiler_params=pltpu.CompilerParams(
            dimension_semantics=dims,
            vmem_limit_bytes=int(vmem_limit)),
        cost_estimate=cost,
    )(x_p, wx_in, wg_in, bx_in, bg_in)

    if M != n_rows or N != dim_out:
        out = out[:n_rows, :dim_out]
    return out.reshape(*lead, dim_out)


def geglu_ref(x, w, b):
    dim_out = w.shape[1] // 2
    y = jnp.dot(x, w, precision=lax.Precision.HIGHEST) + b
    h, g = y[..., :dim_out], y[..., dim_out:]
    return h * (0.5 * g * (1.0 + lax.erf(g / jnp.sqrt(2.0))))


def _make_inputs(key, batch, seq, dim_in, dim_out, dtype=jnp.float32):
    k_x, k_w, k_b = jax.random.split(key, 3)
    bound = 1.0 / math.sqrt(dim_in)
    x = jax.random.normal(k_x, (batch, seq, dim_in), dtype=dtype)
    w = jax.random.uniform(k_w, (dim_in, 2 * dim_out),
                           minval=-bound, maxval=bound, dtype=dtype)
    b = jax.random.uniform(k_b, (2 * dim_out,),
                           minval=-bound, maxval=bound, dtype=dtype)
    return x, w, b


if __name__ == "__main__":
    key = jax.random.PRNGKey(0)
    k1, k2 = jax.random.split(key)

    # Test 1: tiny unaligned shape — exercises the padded / split-w fallback
    # and the whole-K 2-D-grid kernel.
    batch, seq, dim_in, dim_out = 2, 8, 32, 32
    x, w, b = _make_inputs(k1, batch, seq, dim_in, dim_out)
    out = geglu(x, w, b)
    jax.block_until_ready(out)
    ref = geglu_ref(x, w, b)
    assert out.shape == (batch, seq, dim_out)
    assert jnp.allclose(out, ref, atol=1e-4, rtol=1e-4), "mismatch vs reference (small)"

    # Test 2a: SpatialTransformer-like GEGLU widths (inner_dim=512, mult_ff=2 ->
    # dim_in=512, dim_out=1024), auto tiles: whole-K, no weight split (gate half
    # addressed via the offset index_map).
    batch, seq, dim_in, dim_out = 2, 16, 512, 1024
    x2, w2, b2 = _make_inputs(k2, batch, seq, dim_in, dim_out)
    ref2 = geglu_ref(x2, w2, b2)

    out2a = geglu(x2, w2, b2)
    jax.block_until_ready(out2a)
    assert out2a.shape == (batch, seq, dim_out)
    assert jnp.allclose(out2a, ref2, atol=1e-3, rtol=1e-3), "mismatch vs reference (auto)"

    # Test 2b: same shapes with forced small tiles so the K-tiled accumulator
    # path (3-D grid + pl.when init/finalize) with the gate offset index_map is
    # exercised as well.
    out2b = geglu(x2, w2, b2, row_tile=32, n_tile=256, k_tile=128)
    jax.block_until_ready(out2b)
    assert out2b.shape == (batch, seq, dim_out)
    assert jnp.allclose(out2b, ref2, atol=1e-3, rtol=1e-3), "mismatch vs reference (ktiled)"

    print("KERNEL_OK")
</pallas_src>

<mosaic_0001>
module attributes {stable_mosaic.version = 11 : i64} {
  func.func @_geglu_kernel_whole_k(%arg0: i32, %arg1: i32, %arg2: memref<8x128xf32, #tpu.memory_space<vmem>>, %arg3: memref<128x128xf32, #tpu.memory_space<vmem>>, %arg4: memref<128x128xf32, #tpu.memory_space<vmem>>, %arg5: memref<1x128xf32, #tpu.memory_space<vmem>>, %arg6: memref<1x128xf32, #tpu.memory_space<vmem>>, %arg7: memref<8x128xf32, #tpu.memory_space<vmem>>) attributes {dimension_semantics = [#tpu.dimension_semantics<parallel>, #tpu.dimension_semantics<parallel>], iteration_bounds = array<i64: 2, 1>, scalar_prefetch = 0 : i64, scratch_operands = 0 : i64, tpu.core_type = #tpu.core_type<tc>, window_params = [{transform_indices = @transform_0, window_bounds = array<i64: 8, 128>}, {transform_indices = @transform_1, window_bounds = array<i64: 128, 128>}, {transform_indices = @transform_2, window_bounds = array<i64: 128, 128>}, {transform_indices = @transform_3, window_bounds = array<i64: 1, 128>}, {transform_indices = @transform_4, window_bounds = array<i64: 1, 128>}, {transform_indices = @transform_5, window_bounds = array<i64: 8, 128>}]} {
    %c0 = arith.constant 0 : index
    %c0_0 = arith.constant 0 : index
    %0 = vector.load %arg2[%c0, %c0_0] : memref<8x128xf32, #tpu.memory_space<vmem>>, vector<8x128xf32>
    %c0_1 = arith.constant 0 : index
    %c0_2 = arith.constant 0 : index
    %1 = vector.load %arg3[%c0_1, %c0_2] : memref<128x128xf32, #tpu.memory_space<vmem>>, vector<128x128xf32>
    %cst = arith.constant dense<0.000000e+00> : vector<8x128xf32>
    %2 = tpu.matmul %0, %1, %cst {dimension_numbers = #tpu.dot_dimension_numbers<[1], [0], [0], [1], [0, 0, 1, 1], [], []>, precision = #tpu.contract_precision<fp32>} : vector<8x128xf32>, vector<128x128xf32>, vector<8x128xf32> -> vector<8x128xf32>
    %c0_3 = arith.constant 0 : index
    %c0_4 = arith.constant 0 : index
    %3 = vector.load %arg4[%c0_3, %c0_4] : memref<128x128xf32, #tpu.memory_space<vmem>>, vector<128x128xf32>
    %cst_5 = arith.constant dense<0.000000e+00> : vector<8x128xf32>
    %4 = tpu.matmul %0, %3, %cst_5 {dimension_numbers = #tpu.dot_dimension_numbers<[1], [0], [0], [1], [0, 0, 1, 1], [], []>, precision = #tpu.contract_precision<fp32>} : vector<8x128xf32>, vector<128x128xf32>, vector<8x128xf32> -> vector<8x128xf32>
    %c0_6 = arith.constant 0 : index
    %c0_7 = arith.constant 0 : index
    %5 = vector.load %arg5[%c0_6, %c0_7] : memref<1x128xf32, #tpu.memory_space<vmem>>, vector<1x128xf32>
    %6 = vector.broadcast %5 : vector<1x128xf32> to vector<8x128xf32>
    %7 = arith.addf %2, %6 : vector<8x128xf32>
    %c0_8 = arith.constant 0 : index
    %c0_9 = arith.constant 0 : index
    %8 = vector.load %arg6[%c0_8, %c0_9] : memref<1x128xf32, #tpu.memory_space<vmem>>, vector<1x128xf32>
    %9 = vector.broadcast %8 : vector<1x128xf32> to vector<8x128xf32>
    %10 = arith.addf %4, %9 : vector<8x128xf32>
    %cst_10 = arith.constant 5.000000e-01 : f32
    %11 = vector.broadcast %cst_10 : f32 to vector<8x128xf32>
    %12 = arith.mulf %11, %10 : vector<8x128xf32>
    %cst_11 = arith.constant 0.707106769 : f32
    %13 = vector.broadcast %cst_11 : f32 to vector<8x128xf32>
    %14 = arith.mulf %10, %13 : vector<8x128xf32>
    %15 = math.erf %14 : vector<8x128xf32>
    %cst_12 = arith.constant 1.000000e+00 : f32
    %16 = vector.broadcast %cst_12 : f32 to vector<8x128xf32>
    %17 = arith.addf %16, %15 : vector<8x128xf32>
    %18 = arith.mulf %12, %17 : vector<8x128xf32>
    %19 = arith.mulf %7, %18 : vector<8x128xf32>
    %c0_13 = arith.constant 0 : index
    %c0_14 = arith.constant 0 : index
    %20 = vector.load %arg7[%c0_13, %c0_14] : memref<8x128xf32, #tpu.memory_space<vmem>>, vector<8x128xf32>
    tpu.vector_store %arg7[%c0_13, %c0_14], %19 {strides = array<i32>} : memref<8x128xf32, #tpu.memory_space<vmem>>, vector<8x128xf32>,
    return
  }
  func.func @transform_0(%arg0: i32, %arg1: i32) -> (i32, i32) {
    %c0_i32 = arith.constant 0 : i32
    %c0_i32_0 = arith.constant 0 : i32
    return %arg0, %c0_i32 : i32, i32
  }
  func.func @transform_1(%arg0: i32, %arg1: i32) -> (i32, i32) {
    %c0_i32 = arith.constant 0 : i32
    %c0_i32_0 = arith.constant 0 : i32
    return %c0_i32, %arg1 : i32, i32
  }
  func.func @transform_2(%arg0: i32, %arg1: i32) -> (i32, i32) {
    %c0_i32 = arith.constant 0 : i32
    %0 = arith.addi %arg1, %c0_i32 : i32
    %c0_i32_0 = arith.constant 0 : i32
    %c0_i32_1 = arith.constant 0 : i32
    return %c0_i32_0, %0 : i32, i32
  }
  func.func @transform_3(%arg0: i32, %arg1: i32) -> (i32, i32) {
    %c0_i32 = arith.constant 0 : i32
    %c0_i32_0 = arith.constant 0 : i32
    return %c0_i32, %arg1 : i32, i32
  }
  func.func @transform_4(%arg0: i32, %arg1: i32) -> (i32, i32) {
    %c0_i32 = arith.constant 0 : i32
    %c0_i32_0 = arith.constant 0 : i32
    return %c0_i32, %arg1 : i32, i32
  }
  func.func @transform_5(%arg0: i32, %arg1: i32) -> (i32, i32) {
    %c0_i32 = arith.constant 0 : i32
    return %arg0, %arg1 : i32, i32
  }
}

</mosaic_0001>

<llo_original>
// kernel: tpu_custom_call.1
$region0: #{tpu_custom_call.1}
  #allocation0 [shape = 'u32[]', space=smem, size = 0x4, offset = 0x4, fixed_abs, tag = 'smem constant byte address 0x4 - core index']
  #allocation1 [shape = 'u32[144,128]{1,0:T(1,128)}', space=vmem, size = 0x12000, scoped, tag = 'internal scratch']
  %s0 = inlined_call_operand.hbm [shape: f32[16,128], index: 0, kind: input, shape index: {}]
  %s1 = inlined_call_operand.hbm [shape: f32[128,128], index: 1, kind: input, shape index: {}]
  %s2 = inlined_call_operand.hbm [shape: f32[128,128], index: 2, kind: input, shape index: {}]
  %s3 = inlined_call_operand.vmem [shape: f32[1,128], index: 3, kind: input, shape index: {}]
  %s4 = inlined_call_operand.vmem [shape: f32[1,128], index: 4, kind: input, shape index: {}]
  %s5 = inlined_call_operand.hbm [shape: f32[16,128], index: 5, kind: output, shape index: {}]
  %s6 = sld [smem:[#allocation0]]
  $region65: #{tpu_custom_call.1} parent=0
    _
  %s8 = ssub.s32 1, %s6
  %s9 = scalar_select 0, %s8, %s6
  $region1: #{tpu_custom_call.1} parent=0
    #allocation2 [shape = 'u8[8192]{0}', space=vmem, size = 0x2000, scoped, tag = 'input window, operand 0']
    #allocation3 [shape = 's32[2]{0}', space=sflag, size = 0x8, scoped, tag = 'scoped memory for tpu_custom_call.1']
    #allocation4 [shape = 's32[2]{0}', space=sflag, size = 0x8, scoped, tag = 'scoped memory for tpu_custom_call.1']
    #allocation5 [shape = 'u8[65536]{0}', space=vmem, size = 0x10000, scoped, tag = 'input window, operand 1, single buffered']
    #allocation6 [shape = 's32[1]{0}', space=sflag, size = 0x4, scoped, tag = 'scoped memory for tpu_custom_call.1']
    #allocation7 [shape = 'u8[65536]{0}', space=vmem, size = 0x10000, scoped, tag = 'input window, operand 2, single buffered']
    #allocation8 [shape = 'u8[8192]{0}', space=vmem, size = 0x2000, scoped, tag = 'output window, operand 0']
    %10 = vsyncpa [#allocation3], 0
    %s11 = scalar_lea.sflag [#allocation3], 1
    %12 = vsyncpa %s11, 0
    %13 = vsyncpa [#allocation6], 0
    %14 = vsyncpa [#allocation4], 0
    %s15 = scalar_lea.sflag [#allocation4], 1
    %16 = vsyncpa %s15, 0
    loop: start=0, step=1, limit=4
    $region2: #{tpu_custom_call.1} parent=1 // loop_pre_header
      _
    $region3: #{tpu_custom_call.1} parent=1 // loop_header
      %s18 = sphi 0, %s22
      %p19 = scmp.ge.s32.totalorder %s18, 4
      %s25 = sphi 0, %s37
      %s26 = sphi 0, %s33
      %s27 = sphi 0, %s25
      %s28 = sphi 0, %s26
      %s29 = sphi 0, %s27
      %s30 = sphi 0, %s28
      %s40 = sphi 0, %s42
      %s43 = sphi 0, %s40
      %s44 = sphi 0, %s43
      %s60 = sphi 0, %s44
      %s66 = sphi 0, %s68
      %s69 = sphi 0, %s66
      %s70 = sphi 0, %s69
      %s86 = sphi 0, %s70
      %s92 = sphi 0, %s94
      %s95 = sphi 0, %s92
      %s96 = sphi 0, %s95
      %s112 = sphi 0, %s96
      %s118 = sphi 0, %s120
      %s121 = sphi 0, %s118
      %s122 = sphi 0, %s121
      %s138 = sphi 0, %s122
      %s144 = sphi 0, %s146
      %s147 = sphi 0, %s144
      %s148 = sphi 0, %s147
      %s164 = sphi 0, %s148
      %s172 = sphi 0, %s174
      %s175 = sphi 0, %s172
      %s176 = sphi 0, %s175
      %s192 = sphi 0, %s176
    $region4: #{tpu_custom_call.1} parent=1 // loop_header_branch
      %21 = sbr.rel (%p19) target = $region8
    $region5: #{tpu_custom_call.1} parent=1 // loop_body
      %s23 = ssub.s32 %s18, 1
      %s24 = ssub.s32 %s18, 2
      %s31 = sadd.s32 1, %s26
      %p32 = scmp.ge.s32.totalorder %s31, 1
      %s33 = scalar_select %p32, 0, %s31
      %s34 = sadd.s32 1, %s25
      %s35 = scalar_select %p32, %s34, %s25
      %p36 = scmp.ge.s32.totalorder %s35, 2
      %s37 = scalar_select %p36, 0, %s35
      %s38 = ssub.s32 %s25, %s37
      %p39 = scmp.eq.s32.totalorder %s38, 0
      %s41 = sadd.s32 %s40, 1
      %s42 = scalar_select %p39, %s40, %s41
      %p45 = pneg %p39
      %p46 = scmp.eq.s32.totalorder %s18, 1
      %p47 = por %p45, %p46
      %p48 = scmp.ne.s32.totalorder %s40, %s43
      %p49 = scmp.eq.s32.totalorder %s18, 0
      %p50 = por %p48, %p49
      %p51 = scmp.ne.s32.totalorder %s40, %s43
      %p52 = scmp.eq.s32.totalorder %s23, 1
      %p53 = por %p51, %p52
      %p54 = scmp.ne.s32.totalorder %s43, %s44
      %p55 = scmp.eq.s32.totalorder %s23, 0
      %p56 = por %p54, %p55
      %p57 = scmp.ne.s32.totalorder %s43, %s44
      %p58 = scmp.eq.s32.totalorder %s24, 1
      %p59 = por %p57, %p58
      %p61 = scmp.ne.s32.totalorder %s44, %s60
      %p62 = scmp.eq.s32.totalorder %s24, 0
      %p63 = por %p61, %p62
      %s64 = ssub.s32 %s26, %s33
      %p65 = scmp.eq.s32.totalorder %s64, 0
      %s67 = sadd.s32 %s66, 1
      %s68 = scalar_select %p65, %s66, %s67
      %p71 = pneg %p65
      %p72 = scmp.eq.s32.totalorder %s18, 1
      %p73 = por %p71, %p72
      %p74 = scmp.ne.s32.totalorder %s66, %s69
      %p75 = scmp.eq.s32.totalorder %s18, 0
      %p76 = por %p74, %p75
      %p77 = scmp.ne.s32.totalorder %s66, %s69
      %p78 = scmp.eq.s32.totalorder %s23, 1
      %p79 = por %p77, %p78
      %p80 = scmp.ne.s32.totalorder %s69, %s70
      %p81 = scmp.eq.s32.totalorder %s23, 0
      %p82 = por %p80, %p81
      %p83 = scmp.ne.s32.totalorder %s69, %s70
      %p84 = scmp.eq.s32.totalorder %s24, 1
      %p85 = por %p83, %p84
      %p87 = scmp.ne.s32.totalorder %s70, %s86
      %p88 = scmp.eq.s32.totalorder %s24, 0
      %p89 = por %p87, %p88
      %s90 = ssub.s32 %s26, %s33
      %p91 = scmp.eq.s32.totalorder %s90, 0
      %s93 = sadd.s32 %s92, 1
      %s94 = scalar_select %p91, %s92, %s93
      %p97 = pneg %p91
      %p98 = scmp.eq.s32.totalorder %s18, 1
      %p99 = por %p97, %p98
      %p100 = scmp.ne.s32.totalorder %s92, %s95
      %p101 = scmp.eq.s32.totalorder %s18, 0
      %p102 = por %p100, %p101
      %p103 = scmp.ne.s32.totalorder %s92, %s95
      %p104 = scmp.eq.s32.totalorder %s23, 1
      %p105 = por %p103, %p104
      %p106 = scmp.ne.s32.totalorder %s95, %s96
      %p107 = scmp.eq.s32.totalorder %s23, 0
      %p108 = por %p106, %p107
      %p109 = scmp.ne.s32.totalorder %s95, %s96
      %p110 = scmp.eq.s32.totalorder %s24, 1
      %p111 = por %p109, %p110
      %p113 = scmp.ne.s32.totalorder %s96, %s112
      %p114 = scmp.eq.s32.totalorder %s24, 0
      %p115 = por %p113, %p114
      %s116 = ssub.s32 %s26, %s33
      %p117 = scmp.eq.s32.totalorder %s116, 0
      %s119 = sadd.s32 %s118, 1
      %s120 = scalar_select %p117, %s118, %s119
      %p123 = pneg %p117
      %p124 = scmp.eq.s32.totalorder %s18, 1
      %p125 = por %p123, %p124
      %p126 = scmp.ne.s32.totalorder %s118, %s121
      %p127 = scmp.eq.s32.totalorder %s18, 0
      %p128 = por %p126, %p127
      %p129 = scmp.ne.s32.totalorder %s118, %s121
      %p130 = scmp.eq.s32.totalorder %s23, 1
      %p131 = por %p129, %p130
      %p132 = scmp.ne.s32.totalorder %s121, %s122
      %p133 = scmp.eq.s32.totalorder %s23, 0
      %p134 = por %p132, %p133
      %p135 = scmp.ne.s32.totalorder %s121, %s122
      %p136 = scmp.eq.s32.totalorder %s24, 1
      %p137 = por %p135, %p136
      %p139 = scmp.ne.s32.totalorder %s122, %s138
      %p140 = scmp.eq.s32.totalorder %s24, 0
      %p141 = por %p139, %p140
      %s142 = ssub.s32 %s26, %s33
      %p143 = scmp.eq.s32.totalorder %s142, 0
      %s145 = sadd.s32 %s144, 1
      %s146 = scalar_select %p143, %s144, %s145
      %p149 = pneg %p143
      %p150 = scmp.eq.s32.totalorder %s18, 1
      %p151 = por %p149, %p150
      %p152 = scmp.ne.s32.totalorder %s144, %s147
      %p153 = scmp.eq.s32.totalorder %s18, 0
      %p154 = por %p152, %p153
      %p155 = scmp.ne.s32.totalorder %s144, %s147
      %p156 = scmp.eq.s32.totalorder %s23, 1
      %p157 = por %p155, %p156
      %p158 = scmp.ne.s32.totalorder %s147, %s148
      %p159 = scmp.eq.s32.totalorder %s23, 0
      %p160 = por %p158, %p159
      %p161 = scmp.ne.s32.totalorder %s147, %s148
      %p162 = scmp.eq.s32.totalorder %s24, 1
      %p163 = por %p161, %p162
      %p165 = scmp.ne.s32.totalorder %s148, %s164
      %p166 = scmp.eq.s32.totalorder %s24, 0
      %p167 = por %p165, %p166
      %s168 = ssub.s32 %s25, %s37
      %s169 = ssub.s32 %s26, %s33
      %s170 = sor.u32 %s168, %s169
      %p171 = scmp.eq.s32.totalorder %s170, 0
      %s173 = sadd.s32 %s172, 1
      %s174 = scalar_select %p171, %s172, %s173
      %p177 = pneg %p171
      %p178 = scmp.eq.s32.totalorder %s18, 1
      %p179 = por %p177, %p178
      %p180 = scmp.ne.s32.totalorder %s172, %s175
      %p181 = scmp.eq.s32.totalorder %s18, 0
      %p182 = por %p180, %p181
      %p183 = scmp.ne.s32.totalorder %s172, %s175
      %p184 = scmp.eq.s32.totalorder %s23, 1
      %p185 = por %p183, %p184
      %p186 = scmp.ne.s32.totalorder %s175, %s176
      %p187 = scmp.eq.s32.totalorder %s23, 0
      %p188 = por %p186, %p187
      %p189 = scmp.ne.s32.totalorder %s175, %s176
      %p190 = scmp.eq.s32.totalorder %s24, 1
      %p191 = por %p189, %p190
      %p193 = scmp.ne.s32.totalorder %s176, %s192
      %p194 = scmp.eq.s32.totalorder %s24, 0
      %p195 = por %p193, %p194
      %p196 = scmp.le.s32.totalorder 1, %s18
      %p197 = scmp.lt.s32.totalorder %s18, 3
      %p198 = pnand %p196, %p197
      %p199 = pneg %p198
      // Predicated region
      $region9: #{tpu_custom_call.1} parent=5 // pred_check
        _
      $region10: #{tpu_custom_call.1} parent=5 // pred_check_branch
        %201 = sbr.rel (%p198) target = $region12
      $region11: #{tpu_custom_call.1} parent=5 // pred_region
        %s202 = ssub.s32 %s18, 1
        // Predicated region
        $region13: #{tpu_custom_call.1} parent=11 // pred_check
          %p203 = pneg %p82
        $region14: #{tpu_custom_call.1} parent=11 // pred_check_branch
          %205 = sbr.rel (%p203) target = $region16
        $region15: #{tpu_custom_call.1} parent=11 // pred_region
          %s207 = ssub.s32 2048, 2048
          %208 = vsyncadd [#allocation6], %s207
          %s209 = smul.addr %s28, 128
          %s210 = scalar_lea.hbm %s1, %s209
          %s211 = sshll.u32 [#allocation5], 4
          %s212 = int_to_ptr.vmem [resolvable:$true] %s211
          %217 = dma.hbm_to_vmem [thread:$0]  %s210, 2048, %s212, [#allocation6], 128, 128, 8
        $region16: #{tpu_custom_call.1} parent=11 // pred_fallthru
          _
        // Predicated region
        $region17: #{tpu_custom_call.1} parent=11 // pred_check
          %p218 = pneg %p108
        $region18: #{tpu_custom_call.1} parent=11 // pred_check_branch
          %220 = sbr.rel (%p218) target = $region20
        $region19: #{tpu_custom_call.1} parent=11 // pred_region
          %s222 = ssub.s32 2048, 2048
          %223 = vsyncadd [#allocation6], %s222
          %s224 = smul.addr %s28, 128
          %s225 = scalar_lea.hbm %s2, %s224
          %s226 = sshll.u32 [#allocation7], 4
          %s227 = int_to_ptr.vmem [resolvable:$true] %s226
          %232 = dma.hbm_to_vmem [thread:$0]  %s225, 2048, %s227, [#allocation6], 128, 128, 8
        $region20: #{tpu_custom_call.1} parent=11 // pred_fallthru
          _
        // Predicated region
        $region21: #{tpu_custom_call.1} parent=11 // pred_check
          %p233 = pneg %p134
        $region22: #{tpu_custom_call.1} parent=11 // pred_check_branch
          %235 = sbr.rel (%p233) target = $region24
        $region23: #{tpu_custom_call.1} parent=11 // pred_region
          %p236 = scmp.lt.s32.totalorder %s28, 0
          %s237 = scalar_select %p236, %s28, 0
          %s238 = scalar_lea.vmem %s3, %s237
        $region24: #{tpu_custom_call.1} parent=11 // pred_fallthru
          _
        // Predicated region
        $region25: #{tpu_custom_call.1} parent=11 // pred_check
          %p239 = pneg %p160
        $region26: #{tpu_custom_call.1} parent=11 // pred_check_branch
          %241 = sbr.rel (%p239) target = $region28
        $region27: #{tpu_custom_call.1} parent=11 // pred_region
          %p242 = scmp.lt.s32.totalorder %s28, 0
          %s243 = scalar_select %p242, %s28, 0
          %s244 = scalar_lea.vmem %s4, %s243
        $region28: #{tpu_custom_call.1} parent=11 // pred_fallthru
          _
      $region12: #{tpu_custom_call.1} parent=5 // pred_fallthru
        _
      %p245 = scmp.lt.s32.totalorder %s18, 2
      // Predicated region
      $region29: #{tpu_custom_call.1} parent=5 // pred_check
        %p246 = pneg %p245
      $region30: #{tpu_custom_call.1} parent=5 // pred_check_branch
        %248 = sbr.rel (%p246) target = $region32
      $region31: #{tpu_custom_call.1} parent=5 // pred_region
        // Predicated region
        $region33: #{tpu_custom_call.1} parent=31 // pred_check
          %p249 = pneg %p50
        $region34: #{tpu_custom_call.1} parent=31 // pred_check_branch
          %251 = sbr.rel (%p249) target = $region36
        $region35: #{tpu_custom_call.1} parent=31 // pred_region
          %s252 = sand.u32 %s40, 1
          %s253 = scalar_lea.sflag [#allocation3], %s252
          %s254 = sand.u32 %s40, 1
          %s255 = smul.addr %s254, 8
          %s256 = scalar_lea.vmem [#allocation2], %s255
          %s258 = ssub.s32 128, 128
          %259 = vsyncadd %s253, %s258
          %s260 = smul.addr %s25, 128
          %s261 = scalar_lea.hbm %s0, %s260
          %s263 = sshll.u32 %s256, 4
          %s264 = int_to_ptr.vmem [resolvable:$true] %s263
          %266 = dma.hbm_to_vmem [thread:$0]  %s261, 128, %s264, %s253
        $region36: #{tpu_custom_call.1} parent=31 // pred_fallthru
          _
      $region32: #{tpu_custom_call.1} parent=5 // pred_fallthru
        _
      %p267 = scmp.le.s32.totalorder 1, %s18
      %p268 = scmp.lt.s32.totalorder %s18, 3
      %p269 = pnand %p267, %p268
      %p270 = pneg %p269
      // Predicated region
      $region37: #{tpu_custom_call.1} parent=5 // pred_check
        _
      $region38: #{tpu_custom_call.1} parent=5 // pred_check_branch
        %272 = sbr.rel (%p269) target = $region40
      $region39: #{tpu_custom_call.1} parent=5 // pred_region
        %s273 = ssub.s32 %s18, 1
        %s274 = sand.u32 %s43, 1
        %s275 = scalar_lea.sflag [#allocation3], %s274
        %s276 = sand.u32 %s43, 1
        %s277 = smul.addr %s276, 8
        %s278 = scalar_lea.vmem [#allocation2], %s277
        // Predicated region
        $region41: #{tpu_custom_call.1} parent=39 // pred_check
          %p279 = pneg %p56
        $region42: #{tpu_custom_call.1} parent=39 // pred_check_branch
          %281 = sbr.rel (%p279) target = $region44
        $region43: #{tpu_custom_call.1} parent=39 // pred_region
          %282 = dma.done %s275, 128
        $region44: #{tpu_custom_call.1} parent=39 // pred_fallthru
          _
        // Predicated region
        $region45: #{tpu_custom_call.1} parent=39 // pred_check
          %p283 = pneg %p82
        $region46: #{tpu_custom_call.1} parent=39 // pred_check_branch
          %285 = sbr.rel (%p283) target = $region48
        $region47: #{tpu_custom_call.1} parent=39 // pred_region
          %286 = dma.done [#allocation6], 2048
        $region48: #{tpu_custom_call.1} parent=39 // pred_fallthru
          _
        // Predicated region
        $region49: #{tpu_custom_call.1} parent=39 // pred_check
          %p287 = pneg %p108
        $region50: #{tpu_custom_call.1} parent=39 // pred_check_branch
          %289 = sbr.rel (%p287) target = $region52
        $region51: #{tpu_custom_call.1} parent=39 // pred_region
          %290 = dma.done [#allocation6], 2048
        $region52: #{tpu_custom_call.1} parent=39 // pred_fallthru
          _
        %s291 = sand.u32 %s43, 1
        %s292 = scalar_lea.sflag [#allocation3], %s291
        %s293 = sand.u32 %s43, 1
        %s294 = smul.addr %s293, 8
        %s295 = scalar_lea.vmem [#allocation2], %s294
        %p296 = pneg %p56
        %p297 = pneg %p53
        %p298 = pneg %p82
        %p299 = pneg %p79
        %p300 = pneg %p108
        %p301 = pneg %p105
        %p302 = scmp.lt.s32.totalorder %s28, 0
        %s303 = scalar_select %p302, %s28, 0
        %s304 = scalar_lea.vmem %s3, %s303
        %p305 = pneg %p134
        %p306 = pneg %p131
        %p307 = scmp.lt.s32.totalorder %s28, 0
        %s308 = scalar_select %p307, %s28, 0
        %s309 = scalar_lea.vmem %s4, %s308
        %p310 = pneg %p160
        %p311 = pneg %p157
        %p312 = pneg %p188
        %p313 = pneg %p185
        %s314 = sand.u32 %s175, 1
        %s315 = scalar_lea.sflag [#allocation4], %s314
        %s316 = sand.u32 %s175, 1
        %s317 = smul.addr %s316, 8
        %s318 = scalar_lea.vmem [#allocation8], %s317
        %p319 = scmp.lt.s32.totalorder %s28, 0
        %s320 = scalar_select %p319, %s28, 0
        %s321 = scalar_lea.vmem %s3, %s320
        %p322 = scmp.lt.s32.totalorder %s28, 0
        %s323 = scalar_select %p322, %s28, 0
        %s324 = scalar_lea.vmem %s4, %s323
        %v325 = vld [vmem:[%s278] sm:$0xff]
        %v326 = vld [vmem:[#allocation5] sm:$0xff]
        %v327 = vld [vmem:[#allocation5 + $0x8] sm:$0xff]
        %v328 = vld [vmem:[#allocation5 + $0x10] sm:$0xff]
        %v329 = vld [vmem:[#allocation5 + $0x18] sm:$0xff]
        %v330 = vld [vmem:[#allocation5 + $0x20] sm:$0xff]
        %v331 = vld [vmem:[#allocation5 + $0x28] sm:$0xff]
        %v332 = vld [vmem:[#allocation5 + $0x30] sm:$0xff]
        %v333 = vld [vmem:[#allocation5 + $0x38] sm:$0xff]
        %v334 = vld [vmem:[#allocation5 + $0x40] sm:$0xff]
        %v335 = vld [vmem:[#allocation5 + $0x48] sm:$0xff]
        %v336 = vld [vmem:[#allocation5 + $0x50] sm:$0xff]
        %v337 = vld [vmem:[#allocation5 + $0x58] sm:$0xff]
        %v338 = vld [vmem:[#allocation5 + $0x60] sm:$0xff]
        %v339 = vld [vmem:[#allocation5 + $0x68] sm:$0xff]
        %v340 = vld [vmem:[#allocation5 + $0x70] sm:$0xff]
        %v341 = vld [vmem:[#allocation5 + $0x78] sm:$0xff]
        %v342 = vld [vmem:[#allocation7] sm:$0xff]
        %v343 = vld [vmem:[#allocation7 + $0x8] sm:$0xff]
        %v344 = vld [vmem:[#allocation7 + $0x10] sm:$0xff]
        %v345 = vld [vmem:[#allocation7 + $0x18] sm:$0xff]
        %v346 = vld [vmem:[#allocation7 + $0x20] sm:$0xff]
        %v347 = vld [vmem:[#allocation7 + $0x28] sm:$0xff]
        %v348 = vld [vmem:[#allocation7 + $0x30] sm:$0xff]
        %v349 = vld [vmem:[#allocation7 + $0x38] sm:$0xff]
        %v350 = vld [vmem:[#allocation7 + $0x40] sm:$0xff]
        %v351 = vld [vmem:[#allocation7 + $0x48] sm:$0xff]
        %v352 = vld [vmem:[#allocation7 + $0x50] sm:$0xff]
        %v353 = vld [vmem:[#allocation7 + $0x58] sm:$0xff]
        %v354 = vld [vmem:[#allocation7 + $0x60] sm:$0xff]
        %v355 = vld [vmem:[#allocation7 + $0x68] sm:$0xff]
        %v356 = vld [vmem:[#allocation7 + $0x70] sm:$0xff]
        %v357 = vld [vmem:[#allocation7 + $0x78] sm:$0xff]
        %v358 = vld [vmem:[%s321] sm:$0x1]
        %v360 = vlaneseq
        %v361 = vshrl.u32 %v360, 7
        %v362 = vsub.s32 0, %v361
        %v363 = vrot.slane %v358, %v362
        %365 = vmatprep.subr.mxu0 0.0
        %v366 = vand.u32 %v326, 4294901760
        %367 = vmatpush1.msra.mxu0 %v366
        %368 = vmatprep.subr.mxu0 0.0
        %v369 = vand.u32 %v327, 4294901760
        %370 = vmatpush1.msra.mxu0 %v369
        %371 = vmatprep.subr.mxu0 0.0
        %v372 = vand.u32 %v328, 4294901760
        %373 = vmatpush1.msra.mxu0 %v372
        %374 = vmatprep.subr.mxu0 0.0
        %v375 = vand.u32 %v329, 4294901760
        %376 = vmatpush1.msra.mxu0 %v375
        %377 = vmatprep.subr.mxu0 0.0
        %v378 = vand.u32 %v330, 4294901760
        %379 = vmatpush1.msra.mxu0 %v378
        %380 = vmatprep.subr.mxu0 0.0
        %v381 = vand.u32 %v331, 4294901760
        %382 = vmatpush1.msra.mxu0 %v381
        %383 = vmatprep.subr.mxu0 0.0
        %v384 = vand.u32 %v332, 4294901760
        %385 = vmatpush1.msra.mxu0 %v384
        %386 = vmatprep.subr.mxu0 0.0
        %v387 = vand.u32 %v333, 4294901760
        %388 = vmatpush1.msra.mxu0 %v387
        %389 = vmatprep.subr.mxu0 0.0
        %v390 = vand.u32 %v334, 4294901760
        %391 = vmatpush1.msra.mxu0 %v390
        %392 = vmatprep.subr.mxu0 0.0
        %v393 = vand.u32 %v335, 4294901760
        %394 = vmatpush1.msra.mxu0 %v393
        %395 = vmatprep.subr.mxu0 0.0
        %v396 = vand.u32 %v336, 4294901760
        %397 = vmatpush1.msra.mxu0 %v396
        %398 = vmatprep.subr.mxu0 0.0
        %v399 = vand.u32 %v337, 4294901760
        %400 = vmatpush1.msra.mxu0 %v399
        %401 = vmatprep.subr.mxu0 0.0
        %v402 = vand.u32 %v338, 4294901760
        %403 = vmatpush1.msra.mxu0 %v402
        %404 = vmatprep.subr.mxu0 0.0
        %v405 = vand.u32 %v339, 4294901760
        %406 = vmatpush1.msra.mxu0 %v405
        %407 = vmatprep.subr.mxu0 0.0
        %v408 = vand.u32 %v340, 4294901760
        %409 = vmatpush1.msra.mxu0 %v408
        %410 = vmatprep.subr.mxu0 0.0
        %v411 = vand.u32 %v341, 4294901760
        %412 = vmatpush1.msra.mxu0 %v411
        %413 = vmatprep.subr.mxu0 0.0
        %414 = vmatpush1.msra.mxu0 0.0
        %415 = vmatprep.subr.mxu0 0.0
        %416 = vmatpush1.msra.mxu0 0.0
        %417 = vmatprep.subr.mxu0 0.0
        %418 = vmatpush1.msra.mxu0 0.0
        %419 = vmatprep.subr.mxu0 0.0
        %420 = vmatpush1.msra.mxu0 0.0
        %421 = vmatprep.subr.mxu0 0.0
        %422 = vmatpush1.msra.mxu0 0.0
        %423 = vmatprep.subr.mxu0 0.0
        %424 = vmatpush1.msra.mxu0 0.0
        %425 = vmatprep.subr.mxu0 0.0
        %426 = vmatpush1.msra.mxu0 0.0
        %427 = vmatprep.subr.mxu0 0.0
        %428 = vmatpush1.msra.mxu0 0.0
        %429 = vmatprep.subr.mxu0 0.0
        %430 = vmatpush1.msra.mxu0 0.0
        %431 = vmatprep.subr.mxu0 0.0
        %432 = vmatpush1.msra.mxu0 0.0
        %433 = vmatprep.subr.mxu0 0.0
        %434 = vmatpush1.msra.mxu0 0.0
        %435 = vmatprep.subr.mxu0 0.0
        %436 = vmatpush1.msra.mxu0 0.0
        %437 = vmatprep.subr.mxu0 0.0
        %438 = vmatpush1.msra.mxu0 0.0
        %439 = vmatprep.subr.mxu0 0.0
        %440 = vmatpush1.msra.mxu0 0.0
        %441 = vmatprep.subr.mxu0 0.0
        %442 = vmatpush1.msra.mxu0 0.0
        %443 = vmatprep.subr.mxu0 0.0
        %444 = vmatpush1.msra.mxu0 0.0
        %445 = vmatprep.mubr.f32.mxu0 0.0
        %v446 = vand.u32 %v325, 4294901760
        %v447 = vsub.f32 %v325, %v446
        %v448 = vand.u32 %v447, 4294901760
        %v449 = vsub.f32 %v447, %v448
        %v450 = vand.u32 %v449, 4294901760
        %451 = vmatmul.mubr.f32.gmra.mrb[0].mxu0 %v450
        %v452 = vpop.f32.mrb[0].mxu0
        %v453 = vadd.f32 %v363, %v452
        %v454 = vpop.f32.mrb[0].mxu0
        %455 = vdwg.mxu0
        %456 = vmatprep.subr.mxu0 0.0
        %v457 = vand.u32 %v326, 4294901760
        %v458 = vsub.f32 %v326, %v457
        %v459 = vand.u32 %v458, 4294901760
        %v460 = vsub.f32 %v458, %v459
        %v461 = vand.u32 %v460, 4294901760
        %462 = vmatpush1.msra.mxu0 %v461
        %463 = vmatprep.subr.mxu0 0.0
        %v464 = vand.u32 %v327, 4294901760
        %v465 = vsub.f32 %v327, %v464
        %v466 = vand.u32 %v465, 4294901760
        %v467 = vsub.f32 %v465, %v466
        %v468 = vand.u32 %v467, 4294901760
        %469 = vmatpush1.msra.mxu0 %v468
        %470 = vmatprep.subr.mxu0 0.0
        %v471 = vand.u32 %v328, 4294901760
        %v472 = vsub.f32 %v328, %v471
        %v473 = vand.u32 %v472, 4294901760
        %v474 = vsub.f32 %v472, %v473
        %v475 = vand.u32 %v474, 4294901760
        %476 = vmatpush1.msra.mxu0 %v475
        %477 = vmatprep.subr.mxu0 0.0
        %v478 = vand.u32 %v329, 4294901760
        %v479 = vsub.f32 %v329, %v478
        %v480 = vand.u32 %v479, 4294901760
        %v481 = vsub.f32 %v479, %v480
        %v482 = vand.u32 %v481, 4294901760
        %483 = vmatpush1.msra.mxu0 %v482
        %484 = vmatprep.subr.mxu0 0.0
        %v485 = vand.u32 %v330, 4294901760
        %v486 = vsub.f32 %v330, %v485
        %v487 = vand.u32 %v486, 4294901760
        %v488 = vsub.f32 %v486, %v487
        %v489 = vand.u32 %v488, 4294901760
        %490 = vmatpush1.msra.mxu0 %v489
        %491 = vmatprep.subr.mxu0 0.0
        %v492 = vand.u32 %v331, 4294901760
        %v493 = vsub.f32 %v331, %v492
        %v494 = vand.u32 %v493, 4294901760
        %v495 = vsub.f32 %v493, %v494
        %v496 = vand.u32 %v495, 4294901760
        %497 = vmatpush1.msra.mxu0 %v496
        %498 = vmatprep.subr.mxu0 0.0
        %v499 = vand.u32 %v332, 4294901760
        %v500 = vsub.f32 %v332, %v499
        %v501 = vand.u32 %v500, 4294901760
        %v502 = vsub.f32 %v500, %v501
        %v503 = vand.u32 %v502, 4294901760
        %504 = vmatpush1.msra.mxu0 %v503
        %505 = vmatprep.subr.mxu0 0.0
        %v506 = vand.u32 %v333, 4294901760
        %v507 = vsub.f32 %v333, %v506
        %v508 = vand.u32 %v507, 4294901760
        %v509 = vsub.f32 %v507, %v508
        %v510 = vand.u32 %v509, 4294901760
        %511 = vmatpush1.msra.mxu0 %v510
        %512 = vmatprep.subr.mxu0 0.0
        %v513 = vand.u32 %v334, 4294901760
        %v514 = vsub.f32 %v334, %v513
        %v515 = vand.u32 %v514, 4294901760
        %v516 = vsub.f32 %v514, %v515
        %v517 = vand.u32 %v516, 4294901760
        %518 = vmatpush1.msra.mxu0 %v517
        %519 = vmatprep.subr.mxu0 0.0
        %v520 = vand.u32 %v335, 4294901760
        %v521 = vsub.f32 %v335, %v520
        %v522 = vand.u32 %v521, 4294901760
        %v523 = vsub.f32 %v521, %v522
        %v524 = vand.u32 %v523, 4294901760
        %525 = vmatpush1.msra.mxu0 %v524
        %526 = vmatprep.subr.mxu0 0.0
        %v527 = vand.u32 %v336, 4294901760
        %v528 = vsub.f32 %v336, %v527
        %v529 = vand.u32 %v528, 4294901760
        %v530 = vsub.f32 %v528, %v529
        %v531 = vand.u32 %v530, 4294901760
        %532 = vmatpush1.msra.mxu0 %v531
        %533 = vmatprep.subr.mxu0 0.0
        %v534 = vand.u32 %v337, 4294901760
        %v535 = vsub.f32 %v337, %v534
        %v536 = vand.u32 %v535, 4294901760
        %v537 = vsub.f32 %v535, %v536
        %v538 = vand.u32 %v537, 4294901760
        %539 = vmatpush1.msra.mxu0 %v538
        %540 = vmatprep.subr.mxu0 0.0
        %v541 = vand.u32 %v338, 4294901760
        %v542 = vsub.f32 %v338, %v541
        %v543 = vand.u32 %v542, 4294901760
        %v544 = vsub.f32 %v542, %v543
        %v545 = vand.u32 %v544, 4294901760
        %546 = vmatpush1.msra.mxu0 %v545
        %547 = vmatprep.subr.mxu0 0.0
        %v548 = vand.u32 %v339, 4294901760
        %v549 = vsub.f32 %v339, %v548
        %v550 = vand.u32 %v549, 4294901760
        %v551 = vsub.f32 %v549, %v550
        %v552 = vand.u32 %v551, 4294901760
        %553 = vmatpush1.msra.mxu0 %v552
        %554 = vmatprep.subr.mxu0 0.0
        %v555 = vand.u32 %v340, 4294901760
        %v556 = vsub.f32 %v340, %v555
        %v557 = vand.u32 %v556, 4294901760
        %v558 = vsub.f32 %v556, %v557
        %v559 = vand.u32 %v558, 4294901760
        %560 = vmatpush1.msra.mxu0 %v559
        %561 = vmatprep.subr.mxu0 0.0
        %v562 = vand.u32 %v341, 4294901760
        %v563 = vsub.f32 %v341, %v562
        %v564 = vand.u32 %v563, 4294901760
        %v565 = vsub.f32 %v563, %v564
        %v566 = vand.u32 %v565, 4294901760
        %567 = vmatpush1.msra.mxu0 %v566
        %568 = vmatprep.subr.mxu0 0.0
        %569 = vmatpush1.msra.mxu0 0.0
        %570 = vmatprep.subr.mxu0 0.0
        %571 = vmatpush1.msra.mxu0 0.0
        %572 = vmatprep.subr.mxu0 0.0
        %573 = vmatpush1.msra.mxu0 0.0
        %574 = vmatprep.subr.mxu0 0.0
        %575 = vmatpush1.msra.mxu0 0.0
        %576 = vmatprep.subr.mxu0 0.0
        %577 = vmatpush1.msra.mxu0 0.0
        %578 = vmatprep.subr.mxu0 0.0
        %579 = vmatpush1.msra.mxu0 0.0
        %580 = vmatprep.subr.mxu0 0.0
        %581 = vmatpush1.msra.mxu0 0.0
        %582 = vmatprep.subr.mxu0 0.0
        %583 = vmatpush1.msra.mxu0 0.0
        %584 = vmatprep.subr.mxu0 0.0
        %585 = vmatpush1.msra.mxu0 0.0
        %586 = vmatprep.subr.mxu0 0.0
        %587 = vmatpush1.msra.mxu0 0.0
        %588 = vmatprep.subr.mxu0 0.0
        %589 = vmatpush1.msra.mxu0 0.0
        %590 = vmatprep.subr.mxu0 0.0
        %591 = vmatpush1.msra.mxu0 0.0
        %592 = vmatprep.subr.mxu0 0.0
        %593 = vmatpush1.msra.mxu0 0.0
        %594 = vmatprep.subr.mxu0 0.0
        %595 = vmatpush1.msra.mxu0 0.0
        %596 = vmatprep.subr.mxu0 0.0
        %597 = vmatpush1.msra.mxu0 0.0
        %598 = vmatprep.subr.mxu0 0.0
        %599 = vmatpush1.msra.mxu0 0.0
        %600 = vmatprep.mubr.f32.mxu0 0.0
        %v601 = vand.u32 %v325, 4294901760
        %602 = vmatmul.mubr.f32.gmra.mrb[0].mxu0 %v601
        %v603 = vpop.f32.mrb[0].mxu0
        %v604 = vadd.f32 %v453, %v603
        %v605 = vpop.f32.mrb[0].mxu0
        %606 = vdwg.mxu0
        %607 = vmatprep.subr.mxu0 0.0
        %v608 = vand.u32 %v326, 4294901760
        %v609 = vsub.f32 %v326, %v608
        %610 = vmatpush1.msra.mxu0 %v609
        %611 = vmatprep.subr.mxu0 0.0
        %v612 = vand.u32 %v327, 4294901760
        %v613 = vsub.f32 %v327, %v612
        %614 = vmatpush1.msra.mxu0 %v613
        %615 = vmatprep.subr.mxu0 0.0
        %v616 = vand.u32 %v328, 4294901760
        %v617 = vsub.f32 %v328, %v616
        %618 = vmatpush1.msra.mxu0 %v617
        %619 = vmatprep.subr.mxu0 0.0
        %v620 = vand.u32 %v329, 4294901760
        %v621 = vsub.f32 %v329, %v620
        %622 = vmatpush1.msra.mxu0 %v621
        %623 = vmatprep.subr.mxu0 0.0
        %v624 = vand.u32 %v330, 4294901760
        %v625 = vsub.f32 %v330, %v624
        %626 = vmatpush1.msra.mxu0 %v625
        %627 = vmatprep.subr.mxu0 0.0
        %v628 = vand.u32 %v331, 4294901760
        %v629 = vsub.f32 %v331, %v628
        %630 = vmatpush1.msra.mxu0 %v629
        %631 = vmatprep.subr.mxu0 0.0
        %v632 = vand.u32 %v332, 4294901760
        %v633 = vsub.f32 %v332, %v632
        %634 = vmatpush1.msra.mxu0 %v633
        %635 = vmatprep.subr.mxu0 0.0
        %v636 = vand.u32 %v333, 4294901760
        %v637 = vsub.f32 %v333, %v636
        %638 = vmatpush1.msra.mxu0 %v637
        %639 = vmatprep.subr.mxu0 0.0
        %v640 = vand.u32 %v334, 4294901760
        %v641 = vsub.f32 %v334, %v640
        %642 = vmatpush1.msra.mxu0 %v641
        %643 = vmatprep.subr.mxu0 0.0
        %v644 = vand.u32 %v335, 4294901760
        %v645 = vsub.f32 %v335, %v644
        %646 = vmatpush1.msra.mxu0 %v645
        %647 = vmatprep.subr.mxu0 0.0
        %v648 = vand.u32 %v336, 4294901760
        %v649 = vsub.f32 %v336, %v648
        %650 = vmatpush1.msra.mxu0 %v649
        %651 = vmatprep.subr.mxu0 0.0
        %v652 = vand.u32 %v337, 4294901760
        %v653 = vsub.f32 %v337, %v652
        %654 = vmatpush1.msra.mxu0 %v653
        %655 = vmatprep.subr.mxu0 0.0
        %v656 = vand.u32 %v338, 4294901760
        %v657 = vsub.f32 %v338, %v656
        %658 = vmatpush1.msra.mxu0 %v657
        %659 = vmatprep.subr.mxu0 0.0
        %v660 = vand.u32 %v339, 4294901760
        %v661 = vsub.f32 %v339, %v660
        %662 = vmatpush1.msra.mxu0 %v661
        %663 = vmatprep.subr.mxu0 0.0
        %v664 = vand.u32 %v340, 4294901760
        %v665 = vsub.f32 %v340, %v664
        %666 = vmatpush1.msra.mxu0 %v665
        %667 = vmatprep.subr.mxu0 0.0
        %v668 = vand.u32 %v341, 4294901760
        %v669 = vsub.f32 %v341, %v668
        %670 = vmatpush1.msra.mxu0 %v669
        %671 = vmatprep.subr.mxu0 0.0
        %672 = vmatpush1.msra.mxu0 0.0
        %673 = vmatprep.subr.mxu0 0.0
        %674 = vmatpush1.msra.mxu0 0.0
        %675 = vmatprep.subr.mxu0 0.0
        %676 = vmatpush1.msra.mxu0 0.0
        %677 = vmatprep.subr.mxu0 0.0
        %678 = vmatpush1.msra.mxu0 0.0
        %679 = vmatprep.subr.mxu0 0.0
        %680 = vmatpush1.msra.mxu0 0.0
        %681 = vmatprep.subr.mxu0 0.0
        %682 = vmatpush1.msra.mxu0 0.0
        %683 = vmatprep.subr.mxu0 0.0
        %684 = vmatpush1.msra.mxu0 0.0
        %685 = vmatprep.subr.mxu0 0.0
        %686 = vmatpush1.msra.mxu0 0.0
        %687 = vmatprep.subr.mxu0 0.0
        %688 = vmatpush1.msra.mxu0 0.0
        %689 = vmatprep.subr.mxu0 0.0
        %690 = vmatpush1.msra.mxu0 0.0
        %691 = vmatprep.subr.mxu0 0.0
        %692 = vmatpush1.msra.mxu0 0.0
        %693 = vmatprep.subr.mxu0 0.0
        %694 = vmatpush1.msra.mxu0 0.0
        %695 = vmatprep.subr.mxu0 0.0
        %696 = vmatpush1.msra.mxu0 0.0
        %697 = vmatprep.subr.mxu0 0.0
        %698 = vmatpush1.msra.mxu0 0.0
        %699 = vmatprep.subr.mxu0 0.0
        %700 = vmatpush1.msra.mxu0 0.0
        %701 = vmatprep.subr.mxu0 0.0
        %702 = vmatpush1.msra.mxu0 0.0
        %703 = vmatprep.mubr.f32.mxu0 0.0
        %v704 = vand.u32 %v325, 4294901760
        %v705 = vsub.f32 %v325, %v704
        %706 = vmatmul.mubr.f32.gmra.mrb[0].mxu0 %v705
        %v707 = vpop.f32.mrb[0].mxu0
        %v708 = vadd.f32 %v604, %v707
        %v709 = vpop.f32.mrb[0].mxu0
        %710 = vdwg.mxu0
        %711 = vmatprep.subr.mxu0 0.0
        %v712 = vand.u32 %v326, 4294901760
        %713 = vmatpush1.msra.mxu0 %v712
        %714 = vmatprep.subr.mxu0 0.0
        %v715 = vand.u32 %v327, 4294901760
        %716 = vmatpush1.msra.mxu0 %v715
        %717 = vmatprep.subr.mxu0 0.0
        %v718 = vand.u32 %v328, 4294901760
        %719 = vmatpush1.msra.mxu0 %v718
        %720 = vmatprep.subr.mxu0 0.0
        %v721 = vand.u32 %v329, 4294901760
        %722 = vmatpush1.msra.mxu0 %v721
        %723 = vmatprep.subr.mxu0 0.0
        %v724 = vand.u32 %v330, 4294901760
        %725 = vmatpush1.msra.mxu0 %v724
        %726 = vmatprep.subr.mxu0 0.0
        %v727 = vand.u32 %v331, 4294901760
        %728 = vmatpush1.msra.mxu0 %v727
        %729 = vmatprep.subr.mxu0 0.0
        %v730 = vand.u32 %v332, 4294901760
        %731 = vmatpush1.msra.mxu0 %v730
        %732 = vmatprep.subr.mxu0 0.0
        %v733 = vand.u32 %v333, 4294901760
        %734 = vmatpush1.msra.mxu0 %v733
        %735 = vmatprep.subr.mxu0 0.0
        %v736 = vand.u32 %v334, 4294901760
        %737 = vmatpush1.msra.mxu0 %v736
        %738 = vmatprep.subr.mxu0 0.0
        %v739 = vand.u32 %v335, 4294901760
        %740 = vmatpush1.msra.mxu0 %v739
        %741 = vmatprep.subr.mxu0 0.0
        %v742 = vand.u32 %v336, 4294901760
        %743 = vmatpush1.msra.mxu0 %v742
        %744 = vmatprep.subr.mxu0 0.0
        %v745 = vand.u32 %v337, 4294901760
        %746 = vmatpush1.msra.mxu0 %v745
        %747 = vmatprep.subr.mxu0 0.0
        %v748 = vand.u32 %v338, 4294901760
        %749 = vmatpush1.msra.mxu0 %v748
        %750 = vmatprep.subr.mxu0 0.0
        %v751 = vand.u32 %v339, 4294901760
        %752 = vmatpush1.msra.mxu0 %v751
        %753 = vmatprep.subr.mxu0 0.0
        %v754 = vand.u32 %v340, 4294901760
        %755 = vmatpush1.msra.mxu0 %v754
        %756 = vmatprep.subr.mxu0 0.0
        %v757 = vand.u32 %v341, 4294901760
        %758 = vmatpush1.msra.mxu0 %v757
        %759 = vmatprep.subr.mxu0 0.0
        %760 = vmatpush1.msra.mxu0 0.0
        %761 = vmatprep.subr.mxu0 0.0
        %762 = vmatpush1.msra.mxu0 0.0
        %763 = vmatprep.subr.mxu0 0.0
        %764 = vmatpush1.msra.mxu0 0.0
        %765 = vmatprep.subr.mxu0 0.0
        %766 = vmatpush1.msra.mxu0 0.0
        %767 = vmatprep.subr.mxu0 0.0
        %768 = vmatpush1.msra.mxu0 0.0
        %769 = vmatprep.subr.mxu0 0.0
        %770 = vmatpush1.msra.mxu0 0.0
        %771 = vmatprep.subr.mxu0 0.0
        %772 = vmatpush1.msra.mxu0 0.0
        %773 = vmatprep.subr.mxu0 0.0
        %774 = vmatpush1.msra.mxu0 0.0
        %775 = vmatprep.subr.mxu0 0.0
        %776 = vmatpush1.msra.mxu0 0.0
        %777 = vmatprep.subr.mxu0 0.0
        %778 = vmatpush1.msra.mxu0 0.0
        %779 = vmatprep.subr.mxu0 0.0
        %780 = vmatpush1.msra.mxu0 0.0
        %781 = vmatprep.subr.mxu0 0.0
        %782 = vmatpush1.msra.mxu0 0.0
        %783 = vmatprep.subr.mxu0 0.0
        %784 = vmatpush1.msra.mxu0 0.0
        %785 = vmatprep.subr.mxu0 0.0
        %786 = vmatpush1.msra.mxu0 0.0
        %787 = vmatprep.subr.mxu0 0.0
        %788 = vmatpush1.msra.mxu0 0.0
        %789 = vmatprep.subr.mxu0 0.0
        %790 = vmatpush1.msra.mxu0 0.0
        %791 = vmatprep.mubr.f32.mxu0 0.0
        %v792 = vand.u32 %v325, 4294901760
        %v793 = vsub.f32 %v325, %v792
        %v794 = vand.u32 %v793, 4294901760
        %795 = vmatmul.mubr.f32.gmra.mrb[0].mxu0 %v794
        %v796 = vpop.f32.mrb[0].mxu0
        %v797 = vadd.f32 %v708, %v796
        %v798 = vpop.f32.mrb[0].mxu0
        %799 = vdwg.mxu0
        %800 = vmatprep.subr.mxu0 0.0
        %v801 = vand.u32 %v326, 4294901760
        %v802 = vsub.f32 %v326, %v801
        %v803 = vand.u32 %v802, 4294901760
        %804 = vmatpush1.msra.mxu0 %v803
        %805 = vmatprep.subr.mxu0 0.0
        %v806 = vand.u32 %v327, 4294901760
        %v807 = vsub.f32 %v327, %v806
        %v808 = vand.u32 %v807, 4294901760
        %809 = vmatpush1.msra.mxu0 %v808
        %810 = vmatprep.subr.mxu0 0.0
        %v811 = vand.u32 %v328, 4294901760
        %v812 = vsub.f32 %v328, %v811
        %v813 = vand.u32 %v812, 4294901760
        %814 = vmatpush1.msra.mxu0 %v813
        %815 = vmatprep.subr.mxu0 0.0
        %v816 = vand.u32 %v329, 4294901760
        %v817 = vsub.f32 %v329, %v816
        %v818 = vand.u32 %v817, 4294901760
        %819 = vmatpush1.msra.mxu0 %v818
        %820 = vmatprep.subr.mxu0 0.0
        %v821 = vand.u32 %v330, 4294901760
        %v822 = vsub.f32 %v330, %v821
        %v823 = vand.u32 %v822, 4294901760
        %824 = vmatpush1.msra.mxu0 %v823
        %825 = vmatprep.subr.mxu0 0.0
        %v826 = vand.u32 %v331, 4294901760
        %v827 = vsub.f32 %v331, %v826
        %v828 = vand.u32 %v827, 4294901760
        %829 = vmatpush1.msra.mxu0 %v828
        %830 = vmatprep.subr.mxu0 0.0
        %v831 = vand.u32 %v332, 4294901760
        %v832 = vsub.f32 %v332, %v831
        %v833 = vand.u32 %v832, 4294901760
        %834 = vmatpush1.msra.mxu0 %v833
        %835 = vmatprep.subr.mxu0 0.0
        %v836 = vand.u32 %v333, 4294901760
        %v837 = vsub.f32 %v333, %v836
        %v838 = vand.u32 %v837, 4294901760
        %839 = vmatpush1.msra.mxu0 %v838
        %840 = vmatprep.subr.mxu0 0.0
        %v841 = vand.u32 %v334, 4294901760
        %v842 = vsub.f32 %v334, %v841
        %v843 = vand.u32 %v842, 4294901760
        %844 = vmatpush1.msra.mxu0 %v843
        %845 = vmatprep.subr.mxu0 0.0
        %v846 = vand.u32 %v335, 4294901760
        %v847 = vsub.f32 %v335, %v846
        %v848 = vand.u32 %v847, 4294901760
        %849 = vmatpush1.msra.mxu0 %v848
        %850 = vmatprep.subr.mxu0 0.0
        %v851 = vand.u32 %v336, 4294901760
        %v852 = vsub.f32 %v336, %v851
        %v853 = vand.u32 %v852, 4294901760
        %854 = vmatpush1.msra.mxu0 %v853
        %855 = vmatprep.subr.mxu0 0.0
        %v856 = vand.u32 %v337, 4294901760
        %v857 = vsub.f32 %v337, %v856
        %v858 = vand.u32 %v857, 4294901760
        %859 = vmatpush1.msra.mxu0 %v858
        %860 = vmatprep.subr.mxu0 0.0
        %v861 = vand.u32 %v338, 4294901760
        %v862 = vsub.f32 %v338, %v861
        %v863 = vand.u32 %v862, 4294901760
        %864 = vmatpush1.msra.mxu0 %v863
        %865 = vmatprep.subr.mxu0 0.0
        %v866 = vand.u32 %v339, 4294901760
        %v867 = vsub.f32 %v339, %v866
        %v868 = vand.u32 %v867, 4294901760
        %869 = vmatpush1.msra.mxu0 %v868
        %870 = vmatprep.subr.mxu0 0.0
        %v871 = vand.u32 %v340, 4294901760
        %v872 = vsub.f32 %v340, %v871
        %v873 = vand.u32 %v872, 4294901760
        %874 = vmatpush1.msra.mxu0 %v873
        %875 = vmatprep.subr.mxu0 0.0
        %v876 = vand.u32 %v341, 4294901760
        %v877 = vsub.f32 %v341, %v876
        %v878 = vand.u32 %v877, 4294901760
        %879 = vmatpush1.msra.mxu0 %v878
        %880 = vmatprep.subr.mxu0 0.0
        %881 = vmatpush1.msra.mxu0 0.0
        %882 = vmatprep.subr.mxu0 0.0
        %883 = vmatpush1.msra.mxu0 0.0
        %884 = vmatprep.subr.mxu0 0.0
        %885 = vmatpush1.msra.mxu0 0.0
        %886 = vmatprep.subr.mxu0 0.0
        %887 = vmatpush1.msra.mxu0 0.0
        %888 = vmatprep.subr.mxu0 0.0
        %889 = vmatpush1.msra.mxu0 0.0
        %890 = vmatprep.subr.mxu0 0.0
        %891 = vmatpush1.msra.mxu0 0.0
        %892 = vmatprep.subr.mxu0 0.0
        %893 = vmatpush1.msra.mxu0 0.0
        %894 = vmatprep.subr.mxu0 0.0
        %895 = vmatpush1.msra.mxu0 0.0
        %896 = vmatprep.subr.mxu0 0.0
        %897 = vmatpush1.msra.mxu0 0.0
        %898 = vmatprep.subr.mxu0 0.0
        %899 = vmatpush1.msra.mxu0 0.0
        %900 = vmatprep.subr.mxu0 0.0
        %901 = vmatpush1.msra.mxu0 0.0
        %902 = vmatprep.subr.mxu0 0.0
        %903 = vmatpush1.msra.mxu0 0.0
        %904 = vmatprep.subr.mxu0 0.0
        %905 = vmatpush1.msra.mxu0 0.0
        %906 = vmatprep.subr.mxu0 0.0
        %907 = vmatpush1.msra.mxu0 0.0
        %908 = vmatprep.subr.mxu0 0.0
        %909 = vmatpush1.msra.mxu0 0.0
        %910 = vmatprep.subr.mxu0 0.0
        %911 = vmatpush1.msra.mxu0 0.0
        %912 = vmatprep.mubr.f32.mxu0 0.0
        %v913 = vand.u32 %v325, 4294901760
        %914 = vmatmul.mubr.f32.gmra.mrb[0].mxu0 %v913
        %v915 = vpop.f32.mrb[0].mxu0
        %v916 = vadd.f32 %v797, %v915
        %v917 = vpop.f32.mrb[0].mxu0
        %918 = vdwg.mxu0
        %919 = vmatprep.subr.mxu0 0.0
        %v920 = vand.u32 %v326, 4294901760
        %921 = vmatpush1.msra.mxu0 %v920
        %922 = vmatprep.subr.mxu0 0.0
        %v923 = vand.u32 %v327, 4294901760
        %924 = vmatpush1.msra.mxu0 %v923
        %925 = vmatprep.subr.mxu0 0.0
        %v926 = vand.u32 %v328, 4294901760
        %927 = vmatpush1.msra.mxu0 %v926
        %928 = vmatprep.subr.mxu0 0.0
        %v929 = vand.u32 %v329, 4294901760
        %930 = vmatpush1.msra.mxu0 %v929
        %931 = vmatprep.subr.mxu0 0.0
        %v932 = vand.u32 %v330, 4294901760
        %933 = vmatpush1.msra.mxu0 %v932
        %934 = vmatprep.subr.mxu0 0.0
        %v935 = vand.u32 %v331, 4294901760
        %936 = vmatpush1.msra.mxu0 %v935
        %937 = vmatprep.subr.mxu0 0.0
        %v938 = vand.u32 %v332, 4294901760
        %939 = vmatpush1.msra.mxu0 %v938
        %940 = vmatprep.subr.mxu0 0.0
        %v941 = vand.u32 %v333, 4294901760
        %942 = vmatpush1.msra.mxu0 %v941
        %943 = vmatprep.subr.mxu0 0.0
        %v944 = vand.u32 %v334, 4294901760
        %945 = vmatpush1.msra.mxu0 %v944
        %946 = vmatprep.subr.mxu0 0.0
        %v947 = vand.u32 %v335, 4294901760
        %948 = vmatpush1.msra.mxu0 %v947
        %949 = vmatprep.subr.mxu0 0.0
        %v950 = vand.u32 %v336, 4294901760
        %951 = vmatpush1.msra.mxu0 %v950
        %952 = vmatprep.subr.mxu0 0.0
        %v953 = vand.u32 %v337, 4294901760
        %954 = vmatpush1.msra.mxu0 %v953
        %955 = vmatprep.subr.mxu0 0.0
        %v956 = vand.u32 %v338, 4294901760
        %957 = vmatpush1.msra.mxu0 %v956
        %958 = vmatprep.subr.mxu0 0.0
        %v959 = vand.u32 %v339, 4294901760
        %960 = vmatpush1.msra.mxu0 %v959
        %961 = vmatprep.subr.mxu0 0.0
        %v962 = vand.u32 %v340, 4294901760
        %963 = vmatpush1.msra.mxu0 %v962
        %964 = vmatprep.subr.mxu0 0.0
        %v965 = vand.u32 %v341, 4294901760
        %966 = vmatpush1.msra.mxu0 %v965
        %967 = vmatprep.subr.mxu0 0.0
        %968 = vmatpush1.msra.mxu0 0.0
        %969 = vmatprep.subr.mxu0 0.0
        %970 = vmatpush1.msra.mxu0 0.0
        %971 = vmatprep.subr.mxu0 0.0
        %972 = vmatpush1.msra.mxu0 0.0
        %973 = vmatprep.subr.mxu0 0.0
        %974 = vmatpush1.msra.mxu0 0.0
        %975 = vmatprep.subr.mxu0 0.0
        %976 = vmatpush1.msra.mxu0 0.0
        %977 = vmatprep.subr.mxu0 0.0
        %978 = vmatpush1.msra.mxu0 0.0
        %979 = vmatprep.subr.mxu0 0.0
        %980 = vmatpush1.msra.mxu0 0.0
        %981 = vmatprep.subr.mxu0 0.0
        %982 = vmatpush1.msra.mxu0 0.0
        %983 = vmatprep.subr.mxu0 0.0
        %984 = vmatpush1.msra.mxu0 0.0
        %985 = vmatprep.subr.mxu0 0.0
        %986 = vmatpush1.msra.mxu0 0.0
        %987 = vmatprep.subr.mxu0 0.0
        %988 = vmatpush1.msra.mxu0 0.0
        %989 = vmatprep.subr.mxu0 0.0
        %990 = vmatpush1.msra.mxu0 0.0
        %991 = vmatprep.subr.mxu0 0.0
        %992 = vmatpush1.msra.mxu0 0.0
        %993 = vmatprep.subr.mxu0 0.0
        %994 = vmatpush1.msra.mxu0 0.0
        %995 = vmatprep.subr.mxu0 0.0
        %996 = vmatpush1.msra.mxu0 0.0
        %997 = vmatprep.subr.mxu0 0.0
        %998 = vmatpush1.msra.mxu0 0.0
        %999 = vmatprep.mubr.f32.mxu0 0.0
        %v1000 = vand.u32 %v325, 4294901760
        %1001 = vmatmul.mubr.f32.gmra.mrb[0].mxu0 %v1000
        %v1002 = vpop.f32.mrb[0].mxu0
        %v1003 = vadd.f32 %v916, %v1002
        %v1004 = vpop.f32.mrb[0].mxu0
        %1005 = vdwg.mxu0
        %v1006 = vld [vmem:[%s324] sm:$0x1]
        %v1008 = vlaneseq
        %v1009 = vshrl.u32 %v1008, 7
        %v1010 = vsub.s32 0, %v1009
        %v1011 = vrot.slane %v1006, %v1010
        %1013 = vmatprep.subr.mxu0 0.0
        %v1014 = vand.u32 %v342, 4294901760
        %1015 = vmatpush1.msra.mxu0 %v1014
        %1016 = vmatprep.subr.mxu0 0.0
        %v1017 = vand.u32 %v343, 4294901760
        %1018 = vmatpush1.msra.mxu0 %v1017
        %1019 = vmatprep.subr.mxu0 0.0
        %v1020 = vand.u32 %v344, 4294901760
        %1021 = vmatpush1.msra.mxu0 %v1020
        %1022 = vmatprep.subr.mxu0 0.0
        %v1023 = vand.u32 %v345, 4294901760
        %1024 = vmatpush1.msra.mxu0 %v1023
        %1025 = vmatprep.subr.mxu0 0.0
        %v1026 = vand.u32 %v346, 4294901760
        %1027 = vmatpush1.msra.mxu0 %v1026
        %1028 = vmatprep.subr.mxu0 0.0
        %v1029 = vand.u32 %v347, 4294901760
        %1030 = vmatpush1.msra.mxu0 %v1029
        %1031 = vmatprep.subr.mxu0 0.0
        %v1032 = vand.u32 %v348, 4294901760
        %1033 = vmatpush1.msra.mxu0 %v1032
        %1034 = vmatprep.subr.mxu0 0.0
        %v1035 = vand.u32 %v349, 4294901760
        %1036 = vmatpush1.msra.mxu0 %v1035
        %1037 = vmatprep.subr.mxu0 0.0
        %v1038 = vand.u32 %v350, 4294901760
        %1039 = vmatpush1.msra.mxu0 %v1038
        %1040 = vmatprep.subr.mxu0 0.0
        %v1041 = vand.u32 %v351, 4294901760
        %1042 = vmatpush1.msra.mxu0 %v1041
        %1043 = vmatprep.subr.mxu0 0.0
        %v1044 = vand.u32 %v352, 4294901760
        %1045 = vmatpush1.msra.mxu0 %v1044
        %1046 = vmatprep.subr.mxu0 0.0
        %v1047 = vand.u32 %v353, 4294901760
        %1048 = vmatpush1.msra.mxu0 %v1047
        %1049 = vmatprep.subr.mxu0 0.0
        %v1050 = vand.u32 %v354, 4294901760
        %1051 = vmatpush1.msra.mxu0 %v1050
        %1052 = vmatprep.subr.mxu0 0.0
        %v1053 = vand.u32 %v355, 4294901760
        %1054 = vmatpush1.msra.mxu0 %v1053
        %1055 = vmatprep.subr.mxu0 0.0
        %v1056 = vand.u32 %v356, 4294901760
        %1057 = vmatpush1.msra.mxu0 %v1056
        %1058 = vmatprep.subr.mxu0 0.0
        %v1059 = vand.u32 %v357, 4294901760
        %1060 = vmatpush1.msra.mxu0 %v1059
        %1061 = vmatprep.subr.mxu0 0.0
        %1062 = vmatpush1.msra.mxu0 0.0
        %1063 = vmatprep.subr.mxu0 0.0
        %1064 = vmatpush1.msra.mxu0 0.0
        %1065 = vmatprep.subr.mxu0 0.0
        %1066 = vmatpush1.msra.mxu0 0.0
        %1067 = vmatprep.subr.mxu0 0.0
        %1068 = vmatpush1.msra.mxu0 0.0
        %1069 = vmatprep.subr.mxu0 0.0
        %1070 = vmatpush1.msra.mxu0 0.0
        %1071 = vmatprep.subr.mxu0 0.0
        %1072 = vmatpush1.msra.mxu0 0.0
        %1073 = vmatprep.subr.mxu0 0.0
        %1074 = vmatpush1.msra.mxu0 0.0
        %1075 = vmatprep.subr.mxu0 0.0
        %1076 = vmatpush1.msra.mxu0 0.0
        %1077 = vmatprep.subr.mxu0 0.0
        %1078 = vmatpush1.msra.mxu0 0.0
        %1079 = vmatprep.subr.mxu0 0.0
        %1080 = vmatpush1.msra.mxu0 0.0
        %1081 = vmatprep.subr.mxu0 0.0
        %1082 = vmatpush1.msra.mxu0 0.0
        %1083 = vmatprep.subr.mxu0 0.0
        %1084 = vmatpush1.msra.mxu0 0.0
        %1085 = vmatprep.subr.mxu0 0.0
        %1086 = vmatpush1.msra.mxu0 0.0
        %1087 = vmatprep.subr.mxu0 0.0
        %1088 = vmatpush1.msra.mxu0 0.0
        %1089 = vmatprep.subr.mxu0 0.0
        %1090 = vmatpush1.msra.mxu0 0.0
        %1091 = vmatprep.subr.mxu0 0.0
        %1092 = vmatpush1.msra.mxu0 0.0
        %1093 = vmatprep.mubr.f32.mxu0 0.0
        %v1094 = vand.u32 %v325, 4294901760
        %v1095 = vsub.f32 %v325, %v1094
        %v1096 = vand.u32 %v1095, 4294901760
        %v1097 = vsub.f32 %v1095, %v1096
        %v1098 = vand.u32 %v1097, 4294901760
        %1099 = vmatmul.mubr.f32.gmra.mrb[0].mxu0 %v1098
        %v1100 = vpop.f32.mrb[0].mxu0
        %v1101 = vadd.f32 %v1011, %v1100
        %v1102 = vpop.f32.mrb[0].mxu0
        %1103 = vdwg.mxu0
        %1104 = vmatprep.subr.mxu0 0.0
        %v1105 = vand.u32 %v342, 4294901760
        %v1106 = vsub.f32 %v342, %v1105
        %v1107 = vand.u32 %v1106, 4294901760
        %v1108 = vsub.f32 %v1106, %v1107
        %v1109 = vand.u32 %v1108, 4294901760
        %1110 = vmatpush1.msra.mxu0 %v1109
        %1111 = vmatprep.subr.mxu0 0.0
        %v1112 = vand.u32 %v343, 4294901760
        %v1113 = vsub.f32 %v343, %v1112
        %v1114 = vand.u32 %v1113, 4294901760
        %v1115 = vsub.f32 %v1113, %v1114
        %v1116 = vand.u32 %v1115, 4294901760
        %1117 = vmatpush1.msra.mxu0 %v1116
        %1118 = vmatprep.subr.mxu0 0.0
        %v1119 = vand.u32 %v344, 4294901760
        %v1120 = vsub.f32 %v344, %v1119
        %v1121 = vand.u32 %v1120, 4294901760
        %v1122 = vsub.f32 %v1120, %v1121
        %v1123 = vand.u32 %v1122, 4294901760
        %1124 = vmatpush1.msra.mxu0 %v1123
        %1125 = vmatprep.subr.mxu0 0.0
        %v1126 = vand.u32 %v345, 4294901760
        %v1127 = vsub.f32 %v345, %v1126
        %v1128 = vand.u32 %v1127, 4294901760
        %v1129 = vsub.f32 %v1127, %v1128
        %v1130 = vand.u32 %v1129, 4294901760
        %1131 = vmatpush1.msra.mxu0 %v1130
        %1132 = vmatprep.subr.mxu0 0.0
        %v1133 = vand.u32 %v346, 4294901760
        %v1134 = vsub.f32 %v346, %v1133
        %v1135 = vand.u32 %v1134, 4294901760
        %v1136 = vsub.f32 %v1134, %v1135
        %v1137 = vand.u32 %v1136, 4294901760
        %1138 = vmatpush1.msra.mxu0 %v1137
        %1139 = vmatprep.subr.mxu0 0.0
        %v1140 = vand.u32 %v347, 4294901760
        %v1141 = vsub.f32 %v347, %v1140
        %v1142 = vand.u32 %v1141, 4294901760
        %v1143 = vsub.f32 %v1141, %v1142
        %v1144 = vand.u32 %v1143, 4294901760
        %1145 = vmatpush1.msra.mxu0 %v1144
        %1146 = vmatprep.subr.mxu0 0.0
        %v1147 = vand.u32 %v348, 4294901760
        %v1148 = vsub.f32 %v348, %v1147
        %v1149 = vand.u32 %v1148, 4294901760
        %v1150 = vsub.f32 %v1148, %v1149
        %v1151 = vand.u32 %v1150, 4294901760
        %1152 = vmatpush1.msra.mxu0 %v1151
        %1153 = vmatprep.subr.mxu0 0.0
        %v1154 = vand.u32 %v349, 4294901760
        %v1155 = vsub.f32 %v349, %v1154
        %v1156 = vand.u32 %v1155, 4294901760
        %v1157 = vsub.f32 %v1155, %v1156
        %v1158 = vand.u32 %v1157, 4294901760
        %1159 = vmatpush1.msra.mxu0 %v1158
        %1160 = vmatprep.subr.mxu0 0.0
        %v1161 = vand.u32 %v350, 4294901760
        %v1162 = vsub.f32 %v350, %v1161
        %v1163 = vand.u32 %v1162, 4294901760
        %v1164 = vsub.f32 %v1162, %v1163
        %v1165 = vand.u32 %v1164, 4294901760
        %1166 = vmatpush1.msra.mxu0 %v1165
        %1167 = vmatprep.subr.mxu0 0.0
        %v1168 = vand.u32 %v351, 4294901760
        %v1169 = vsub.f32 %v351, %v1168
        %v1170 = vand.u32 %v1169, 4294901760
        %v1171 = vsub.f32 %v1169, %v1170
        %v1172 = vand.u32 %v1171, 4294901760
        %1173 = vmatpush1.msra.mxu0 %v1172
        %1174 = vmatprep.subr.mxu0 0.0
        %v1175 = vand.u32 %v352, 4294901760
        %v1176 = vsub.f32 %v352, %v1175
        %v1177 = vand.u32 %v1176, 4294901760
        %v1178 = vsub.f32 %v1176, %v1177
        %v1179 = vand.u32 %v1178, 4294901760
        %1180 = vmatpush1.msra.mxu0 %v1179
        %1181 = vmatprep.subr.mxu0 0.0
        %v1182 = vand.u32 %v353, 4294901760
        %v1183 = vsub.f32 %v353, %v1182
        %v1184 = vand.u32 %v1183, 4294901760
        %v1185 = vsub.f32 %v1183, %v1184
        %v1186 = vand.u32 %v1185, 4294901760
        %1187 = vmatpush1.msra.mxu0 %v1186
        %1188 = vmatprep.subr.mxu0 0.0
        %v1189 = vand.u32 %v354, 4294901760
        %v1190 = vsub.f32 %v354, %v1189
        %v1191 = vand.u32 %v1190, 4294901760
        %v1192 = vsub.f32 %v1190, %v1191
        %v1193 = vand.u32 %v1192, 4294901760
        %1194 = vmatpush1.msra.mxu0 %v1193
        %1195 = vmatprep.subr.mxu0 0.0
        %v1196 = vand.u32 %v355, 4294901760
        %v1197 = vsub.f32 %v355, %v1196
        %v1198 = vand.u32 %v1197, 4294901760
        %v1199 = vsub.f32 %v1197, %v1198
        %v1200 = vand.u32 %v1199, 4294901760
        %1201 = vmatpush1.msra.mxu0 %v1200
        %1202 = vmatprep.subr.mxu0 0.0
        %v1203 = vand.u32 %v356, 4294901760
        %v1204 = vsub.f32 %v356, %v1203
        %v1205 = vand.u32 %v1204, 4294901760
        %v1206 = vsub.f32 %v1204, %v1205
        %v1207 = vand.u32 %v1206, 4294901760
        %1208 = vmatpush1.msra.mxu0 %v1207
        %1209 = vmatprep.subr.mxu0 0.0
        %v1210 = vand.u32 %v357, 4294901760
        %v1211 = vsub.f32 %v357, %v1210
        %v1212 = vand.u32 %v1211, 4294901760
        %v1213 = vsub.f32 %v1211, %v1212
        %v1214 = vand.u32 %v1213, 4294901760
        %1215 = vmatpush1.msra.mxu0 %v1214
        %1216 = vmatprep.subr.mxu0 0.0
        %1217 = vmatpush1.msra.mxu0 0.0
        %1218 = vmatprep.subr.mxu0 0.0
        %1219 = vmatpush1.msra.mxu0 0.0
        %1220 = vmatprep.subr.mxu0 0.0
        %1221 = vmatpush1.msra.mxu0 0.0
        %1222 = vmatprep.subr.mxu0 0.0
        %1223 = vmatpush1.msra.mxu0 0.0
        %1224 = vmatprep.subr.mxu0 0.0
        %1225 = vmatpush1.msra.mxu0 0.0
        %1226 = vmatprep.subr.mxu0 0.0
        %1227 = vmatpush1.msra.mxu0 0.0
        %1228 = vmatprep.subr.mxu0 0.0
        %1229 = vmatpush1.msra.mxu0 0.0
        %1230 = vmatprep.subr.mxu0 0.0
        %1231 = vmatpush1.msra.mxu0 0.0
        %1232 = vmatprep.subr.mxu0 0.0
        %1233 = vmatpush1.msra.mxu0 0.0
        %1234 = vmatprep.subr.mxu0 0.0
        %1235 = vmatpush1.msra.mxu0 0.0
        %1236 = vmatprep.subr.mxu0 0.0
        %1237 = vmatpush1.msra.mxu0 0.0
        %1238 = vmatprep.subr.mxu0 0.0
        %1239 = vmatpush1.msra.mxu0 0.0
        %1240 = vmatprep.subr.mxu0 0.0
        %1241 = vmatpush1.msra.mxu0 0.0
        %1242 = vmatprep.subr.mxu0 0.0
        %1243 = vmatpush1.msra.mxu0 0.0
        %1244 = vmatprep.subr.mxu0 0.0
        %1245 = vmatpush1.msra.mxu0 0.0
        %1246 = vmatprep.subr.mxu0 0.0
        %1247 = vmatpush1.msra.mxu0 0.0
        %1248 = vmatprep.mubr.f32.mxu0 0.0
        %v1249 = vand.u32 %v325, 4294901760
        %1250 = vmatmul.mubr.f32.gmra.mrb[0].mxu0 %v1249
        %v1251 = vpop.f32.mrb[0].mxu0
        %v1252 = vadd.f32 %v1101, %v1251
        %v1253 = vpop.f32.mrb[0].mxu0
        %1254 = vdwg.mxu0
        %1255 = vmatprep.subr.mxu0 0.0
        %v1256 = vand.u32 %v342, 4294901760
        %v1257 = vsub.f32 %v342, %v1256
        %1258 = vmatpush1.msra.mxu0 %v1257
        %1259 = vmatprep.subr.mxu0 0.0
        %v1260 = vand.u32 %v343, 4294901760
        %v1261 = vsub.f32 %v343, %v1260
        %1262 = vmatpush1.msra.mxu0 %v1261
        %1263 = vmatprep.subr.mxu0 0.0
        %v1264 = vand.u32 %v344, 4294901760
        %v1265 = vsub.f32 %v344, %v1264
        %1266 = vmatpush1.msra.mxu0 %v1265
        %1267 = vmatprep.subr.mxu0 0.0
        %v1268 = vand.u32 %v345, 4294901760
        %v1269 = vsub.f32 %v345, %v1268
        %1270 = vmatpush1.msra.mxu0 %v1269
        %1271 = vmatprep.subr.mxu0 0.0
        %v1272 = vand.u32 %v346, 4294901760
        %v1273 = vsub.f32 %v346, %v1272
        %1274 = vmatpush1.msra.mxu0 %v1273
        %1275 = vmatprep.subr.mxu0 0.0
        %v1276 = vand.u32 %v347, 4294901760
        %v1277 = vsub.f32 %v347, %v1276
        %1278 = vmatpush1.msra.mxu0 %v1277
        %1279 = vmatprep.subr.mxu0 0.0
        %v1280 = vand.u32 %v348, 4294901760
        %v1281 = vsub.f32 %v348, %v1280
        %1282 = vmatpush1.msra.mxu0 %v1281
        %1283 = vmatprep.subr.mxu0 0.0
        %v1284 = vand.u32 %v349, 4294901760
        %v1285 = vsub.f32 %v349, %v1284
        %1286 = vmatpush1.msra.mxu0 %v1285
        %1287 = vmatprep.subr.mxu0 0.0
        %v1288 = vand.u32 %v350, 4294901760
        %v1289 = vsub.f32 %v350, %v1288
        %1290 = vmatpush1.msra.mxu0 %v1289
        %1291 = vmatprep.subr.mxu0 0.0
        %v1292 = vand.u32 %v351, 4294901760
        %v1293 = vsub.f32 %v351, %v1292
        %1294 = vmatpush1.msra.mxu0 %v1293
        %1295 = vmatprep.subr.mxu0 0.0
        %v1296 = vand.u32 %v352, 4294901760
        %v1297 = vsub.f32 %v352, %v1296
        %1298 = vmatpush1.msra.mxu0 %v1297
        %1299 = vmatprep.subr.mxu0 0.0
        %v1300 = vand.u32 %v353, 4294901760
        %v1301 = vsub.f32 %v353, %v1300
        %1302 = vmatpush1.msra.mxu0 %v1301
        %1303 = vmatprep.subr.mxu0 0.0
        %v1304 = vand.u32 %v354, 4294901760
        %v1305 = vsub.f32 %v354, %v1304
        %1306 = vmatpush1.msra.mxu0 %v1305
        %1307 = vmatprep.subr.mxu0 0.0
        %v1308 = vand.u32 %v355, 4294901760
        %v1309 = vsub.f32 %v355, %v1308
        %1310 = vmatpush1.msra.mxu0 %v1309
        %1311 = vmatprep.subr.mxu0 0.0
        %v1312 = vand.u32 %v356, 4294901760
        %v1313 = vsub.f32 %v356, %v1312
        %1314 = vmatpush1.msra.mxu0 %v1313
        %1315 = vmatprep.subr.mxu0 0.0
        %v1316 = vand.u32 %v357, 4294901760
        %v1317 = vsub.f32 %v357, %v1316
        %1318 = vmatpush1.msra.mxu0 %v1317
        %1319 = vmatprep.subr.mxu0 0.0
        %1320 = vmatpush1.msra.mxu0 0.0
        %1321 = vmatprep.subr.mxu0 0.0
        %1322 = vmatpush1.msra.mxu0 0.0
        %1323 = vmatprep.subr.mxu0 0.0
        %1324 = vmatpush1.msra.mxu0 0.0
        %1325 = vmatprep.subr.mxu0 0.0
        %1326 = vmatpush1.msra.mxu0 0.0
        %1327 = vmatprep.subr.mxu0 0.0
        %1328 = vmatpush1.msra.mxu0 0.0
        %1329 = vmatprep.subr.mxu0 0.0
        %1330 = vmatpush1.msra.mxu0 0.0
        %1331 = vmatprep.subr.mxu0 0.0
        %1332 = vmatpush1.msra.mxu0 0.0
        %1333 = vmatprep.subr.mxu0 0.0
        %1334 = vmatpush1.msra.mxu0 0.0
        %1335 = vmatprep.subr.mxu0 0.0
        %1336 = vmatpush1.msra.mxu0 0.0
        %1337 = vmatprep.subr.mxu0 0.0
        %1338 = vmatpush1.msra.mxu0 0.0
        %1339 = vmatprep.subr.mxu0 0.0
        %1340 = vmatpush1.msra.mxu0 0.0
        %1341 = vmatprep.subr.mxu0 0.0
        %1342 = vmatpush1.msra.mxu0 0.0
        %1343 = vmatprep.subr.mxu0 0.0
        %1344 = vmatpush1.msra.mxu0 0.0
        %1345 = vmatprep.subr.mxu0 0.0
        %1346 = vmatpush1.msra.mxu0 0.0
        %1347 = vmatprep.subr.mxu0 0.0
        %1348 = vmatpush1.msra.mxu0 0.0
        %1349 = vmatprep.subr.mxu0 0.0
        %1350 = vmatpush1.msra.mxu0 0.0
        %1351 = vmatprep.mubr.f32.mxu0 0.0
        %v1352 = vand.u32 %v325, 4294901760
        %v1353 = vsub.f32 %v325, %v1352
        %1354 = vmatmul.mubr.f32.gmra.mrb[0].mxu0 %v1353
        %v1355 = vpop.f32.mrb[0].mxu0
        %v1356 = vadd.f32 %v1252, %v1355
        %v1357 = vpop.f32.mrb[0].mxu0
        %1358 = vdwg.mxu0
        %1359 = vmatprep.subr.mxu0 0.0
        %v1360 = vand.u32 %v342, 4294901760
        %1361 = vmatpush1.msra.mxu0 %v1360
        %1362 = vmatprep.subr.mxu0 0.0
        %v1363 = vand.u32 %v343, 4294901760
        %1364 = vmatpush1.msra.mxu0 %v1363
        %1365 = vmatprep.subr.mxu0 0.0
        %v1366 = vand.u32 %v344, 4294901760
        %1367 = vmatpush1.msra.mxu0 %v1366
        %1368 = vmatprep.subr.mxu0 0.0
        %v1369 = vand.u32 %v345, 4294901760
        %1370 = vmatpush1.msra.mxu0 %v1369
        %1371 = vmatprep.subr.mxu0 0.0
        %v1372 = vand.u32 %v346, 4294901760
        %1373 = vmatpush1.msra.mxu0 %v1372
        %1374 = vmatprep.subr.mxu0 0.0
        %v1375 = vand.u32 %v347, 4294901760
        %1376 = vmatpush1.msra.mxu0 %v1375
        %1377 = vmatprep.subr.mxu0 0.0
        %v1378 = vand.u32 %v348, 4294901760
        %1379 = vmatpush1.msra.mxu0 %v1378
        %1380 = vmatprep.subr.mxu0 0.0
        %v1381 = vand.u32 %v349, 4294901760
        %1382 = vmatpush1.msra.mxu0 %v1381
        %1383 = vmatprep.subr.mxu0 0.0
        %v1384 = vand.u32 %v350, 4294901760
        %1385 = vmatpush1.msra.mxu0 %v1384
        %1386 = vmatprep.subr.mxu0 0.0
        %v1387 = vand.u32 %v351, 4294901760
        %1388 = vmatpush1.msra.mxu0 %v1387
        %1389 = vmatprep.subr.mxu0 0.0
        %v1390 = vand.u32 %v352, 4294901760
        %1391 = vmatpush1.msra.mxu0 %v1390
        %1392 = vmatprep.subr.mxu0 0.0
        %v1393 = vand.u32 %v353, 4294901760
        %1394 = vmatpush1.msra.mxu0 %v1393
        %1395 = vmatprep.subr.mxu0 0.0
        %v1396 = vand.u32 %v354, 4294901760
        %1397 = vmatpush1.msra.mxu0 %v1396
        %1398 = vmatprep.subr.mxu0 0.0
        %v1399 = vand.u32 %v355, 4294901760
        %1400 = vmatpush1.msra.mxu0 %v1399
        %1401 = vmatprep.subr.mxu0 0.0
        %v1402 = vand.u32 %v356, 4294901760
        %1403 = vmatpush1.msra.mxu0 %v1402
        %1404 = vmatprep.subr.mxu0 0.0
        %v1405 = vand.u32 %v357, 4294901760
        %1406 = vmatpush1.msra.mxu0 %v1405
        %1407 = vmatprep.subr.mxu0 0.0
        %1408 = vmatpush1.msra.mxu0 0.0
        %1409 = vmatprep.subr.mxu0 0.0
        %1410 = vmatpush1.msra.mxu0 0.0
        %1411 = vmatprep.subr.mxu0 0.0
        %1412 = vmatpush1.msra.mxu0 0.0
        %1413 = vmatprep.subr.mxu0 0.0
        %1414 = vmatpush1.msra.mxu0 0.0
        %1415 = vmatprep.subr.mxu0 0.0
        %1416 = vmatpush1.msra.mxu0 0.0
        %1417 = vmatprep.subr.mxu0 0.0
        %1418 = vmatpush1.msra.mxu0 0.0
        %1419 = vmatprep.subr.mxu0 0.0
        %1420 = vmatpush1.msra.mxu0 0.0
        %1421 = vmatprep.subr.mxu0 0.0
        %1422 = vmatpush1.msra.mxu0 0.0
        %1423 = vmatprep.subr.mxu0 0.0
        %1424 = vmatpush1.msra.mxu0 0.0
        %1425 = vmatprep.subr.mxu0 0.0
        %1426 = vmatpush1.msra.mxu0 0.0
        %1427 = vmatprep.subr.mxu0 0.0
        %1428 = vmatpush1.msra.mxu0 0.0
        %1429 = vmatprep.subr.mxu0 0.0
        %1430 = vmatpush1.msra.mxu0 0.0
        %1431 = vmatprep.subr.mxu0 0.0
        %1432 = vmatpush1.msra.mxu0 0.0
        %1433 = vmatprep.subr.mxu0 0.0
        %1434 = vmatpush1.msra.mxu0 0.0
        %1435 = vmatprep.subr.mxu0 0.0
        %1436 = vmatpush1.msra.mxu0 0.0
        %1437 = vmatprep.subr.mxu0 0.0
        %1438 = vmatpush1.msra.mxu0 0.0
        %1439 = vmatprep.mubr.f32.mxu0 0.0
        %v1440 = vand.u32 %v325, 4294901760
        %v1441 = vsub.f32 %v325, %v1440
        %v1442 = vand.u32 %v1441, 4294901760
        %1443 = vmatmul.mubr.f32.gmra.mrb[0].mxu0 %v1442
        %v1444 = vpop.f32.mrb[0].mxu0
        %v1445 = vadd.f32 %v1356, %v1444
        %v1446 = vpop.f32.mrb[0].mxu0
        %1447 = vdwg.mxu0
        %1448 = vmatprep.subr.mxu0 0.0
        %v1449 = vand.u32 %v342, 4294901760
        %v1450 = vsub.f32 %v342, %v1449
        %v1451 = vand.u32 %v1450, 4294901760
        %1452 = vmatpush1.msra.mxu0 %v1451
        %1453 = vmatprep.subr.mxu0 0.0
        %v1454 = vand.u32 %v343, 4294901760
        %v1455 = vsub.f32 %v343, %v1454
        %v1456 = vand.u32 %v1455, 4294901760
        %1457 = vmatpush1.msra.mxu0 %v1456
        %1458 = vmatprep.subr.mxu0 0.0
        %v1459 = vand.u32 %v344, 4294901760
        %v1460 = vsub.f32 %v344, %v1459
        %v1461 = vand.u32 %v1460, 4294901760
        %1462 = vmatpush1.msra.mxu0 %v1461
        %1463 = vmatprep.subr.mxu0 0.0
        %v1464 = vand.u32 %v345, 4294901760
        %v1465 = vsub.f32 %v345, %v1464
        %v1466 = vand.u32 %v1465, 4294901760
        %1467 = vmatpush1.msra.mxu0 %v1466
        %1468 = vmatprep.subr.mxu0 0.0
        %v1469 = vand.u32 %v346, 4294901760
        %v1470 = vsub.f32 %v346, %v1469
        %v1471 = vand.u32 %v1470, 4294901760
        %1472 = vmatpush1.msra.mxu0 %v1471
        %1473 = vmatprep.subr.mxu0 0.0
        %v1474 = vand.u32 %v347, 4294901760
        %v1475 = vsub.f32 %v347, %v1474
        %v1476 = vand.u32 %v1475, 4294901760
        %1477 = vmatpush1.msra.mxu0 %v1476
        %1478 = vmatprep.subr.mxu0 0.0
        %v1479 = vand.u32 %v348, 4294901760
        %v1480 = vsub.f32 %v348, %v1479
        %v1481 = vand.u32 %v1480, 4294901760
        %1482 = vmatpush1.msra.mxu0 %v1481
        %1483 = vmatprep.subr.mxu0 0.0
        %v1484 = vand.u32 %v349, 4294901760
        %v1485 = vsub.f32 %v349, %v1484
        %v1486 = vand.u32 %v1485, 4294901760
        %1487 = vmatpush1.msra.mxu0 %v1486
        %1488 = vmatprep.subr.mxu0 0.0
        %v1489 = vand.u32 %v350, 4294901760
        %v1490 = vsub.f32 %v350, %v1489
        %v1491 = vand.u32 %v1490, 4294901760
        %1492 = vmatpush1.msra.mxu0 %v1491
        %1493 = vmatprep.subr.mxu0 0.0
        %v1494 = vand.u32 %v351, 4294901760
        %v1495 = vsub.f32 %v351, %v1494
        %v1496 = vand.u32 %v1495, 4294901760
        %1497 = vmatpush1.msra.mxu0 %v1496
        %1498 = vmatprep.subr.mxu0 0.0
        %v1499 = vand.u32 %v352, 4294901760
        %v1500 = vsub.f32 %v352, %v1499
        %v1501 = vand.u32 %v1500, 4294901760
        %1502 = vmatpush1.msra.mxu0 %v1501
        %1503 = vmatprep.subr.mxu0 0.0
        %v1504 = vand.u32 %v353, 4294901760
        %v1505 = vsub.f32 %v353, %v1504
        %v1506 = vand.u32 %v1505, 4294901760
        %1507 = vmatpush1.msra.mxu0 %v1506
        %1508 = vmatprep.subr.mxu0 0.0
        %v1509 = vand.u32 %v354, 4294901760
        %v1510 = vsub.f32 %v354, %v1509
        %v1511 = vand.u32 %v1510, 4294901760
        %1512 = vmatpush1.msra.mxu0 %v1511
        %1513 = vmatprep.subr.mxu0 0.0
        %v1514 = vand.u32 %v355, 4294901760
        %v1515 = vsub.f32 %v355, %v1514
        %v1516 = vand.u32 %v1515, 4294901760
        %1517 = vmatpush1.msra.mxu0 %v1516
        %1518 = vmatprep.subr.mxu0 0.0
        %v1519 = vand.u32 %v356, 4294901760
        %v1520 = vsub.f32 %v356, %v1519
        %v1521 = vand.u32 %v1520, 4294901760
        %1522 = vmatpush1.msra.mxu0 %v1521
        %1523 = vmatprep.subr.mxu0 0.0
        %v1524 = vand.u32 %v357, 4294901760
        %v1525 = vsub.f32 %v357, %v1524
        %v1526 = vand.u32 %v1525, 4294901760
        %1527 = vmatpush1.msra.mxu0 %v1526
        %1528 = vmatprep.subr.mxu0 0.0
        %1529 = vmatpush1.msra.mxu0 0.0
        %1530 = vmatprep.subr.mxu0 0.0
        %1531 = vmatpush1.msra.mxu0 0.0
        %1532 = vmatprep.subr.mxu0 0.0
        %1533 = vmatpush1.msra.mxu0 0.0
        %1534 = vmatprep.subr.mxu0 0.0
        %1535 = vmatpush1.msra.mxu0 0.0
        %1536 = vmatprep.subr.mxu0 0.0
        %1537 = vmatpush1.msra.mxu0 0.0
        %1538 = vmatprep.subr.mxu0 0.0
        %1539 = vmatpush1.msra.mxu0 0.0
        %1540 = vmatprep.subr.mxu0 0.0
        %1541 = vmatpush1.msra.mxu0 0.0
        %1542 = vmatprep.subr.mxu0 0.0
        %1543 = vmatpush1.msra.mxu0 0.0
        %1544 = vmatprep.subr.mxu0 0.0
        %1545 = vmatpush1.msra.mxu0 0.0
        %1546 = vmatprep.subr.mxu0 0.0
        %1547 = vmatpush1.msra.mxu0 0.0
        %1548 = vmatprep.subr.mxu0 0.0
        %1549 = vmatpush1.msra.mxu0 0.0
        %1550 = vmatprep.subr.mxu0 0.0
        %1551 = vmatpush1.msra.mxu0 0.0
        %1552 = vmatprep.subr.mxu0 0.0
        %1553 = vmatpush1.msra.mxu0 0.0
        %1554 = vmatprep.subr.mxu0 0.0
        %1555 = vmatpush1.msra.mxu0 0.0
        %1556 = vmatprep.subr.mxu0 0.0
        %1557 = vmatpush1.msra.mxu0 0.0
        %1558 = vmatprep.subr.mxu0 0.0
        %1559 = vmatpush1.msra.mxu0 0.0
        %1560 = vmatprep.mubr.f32.mxu0 0.0
        %v1561 = vand.u32 %v325, 4294901760
        %1562 = vmatmul.mubr.f32.gmra.mrb[0].mxu0 %v1561
        %v1563 = vpop.f32.mrb[0].mxu0
        %v1564 = vadd.f32 %v1445, %v1563
        %v1565 = vpop.f32.mrb[0].mxu0
        %1566 = vdwg.mxu0
        %1567 = vmatprep.subr.mxu0 0.0
        %v1568 = vand.u32 %v342, 4294901760
        %1569 = vmatpush1.msra.mxu0 %v1568
        %1570 = vmatprep.subr.mxu0 0.0
        %v1571 = vand.u32 %v343, 4294901760
        %1572 = vmatpush1.msra.mxu0 %v1571
        %1573 = vmatprep.subr.mxu0 0.0
        %v1574 = vand.u32 %v344, 4294901760
        %1575 = vmatpush1.msra.mxu0 %v1574
        %1576 = vmatprep.subr.mxu0 0.0
        %v1577 = vand.u32 %v345, 4294901760
        %1578 = vmatpush1.msra.mxu0 %v1577
        %1579 = vmatprep.subr.mxu0 0.0
        %v1580 = vand.u32 %v346, 4294901760
        %1581 = vmatpush1.msra.mxu0 %v1580
        %1582 = vmatprep.subr.mxu0 0.0
        %v1583 = vand.u32 %v347, 4294901760
        %1584 = vmatpush1.msra.mxu0 %v1583
        %1585 = vmatprep.subr.mxu0 0.0
        %v1586 = vand.u32 %v348, 4294901760
        %1587 = vmatpush1.msra.mxu0 %v1586
        %1588 = vmatprep.subr.mxu0 0.0
        %v1589 = vand.u32 %v349, 4294901760
        %1590 = vmatpush1.msra.mxu0 %v1589
        %1591 = vmatprep.subr.mxu0 0.0
        %v1592 = vand.u32 %v350, 4294901760
        %1593 = vmatpush1.msra.mxu0 %v1592
        %1594 = vmatprep.subr.mxu0 0.0
        %v1595 = vand.u32 %v351, 4294901760
        %1596 = vmatpush1.msra.mxu0 %v1595
        %1597 = vmatprep.subr.mxu0 0.0
        %v1598 = vand.u32 %v352, 4294901760
        %1599 = vmatpush1.msra.mxu0 %v1598
        %1600 = vmatprep.subr.mxu0 0.0
        %v1601 = vand.u32 %v353, 4294901760
        %1602 = vmatpush1.msra.mxu0 %v1601
        %1603 = vmatprep.subr.mxu0 0.0
        %v1604 = vand.u32 %v354, 4294901760
        %1605 = vmatpush1.msra.mxu0 %v1604
        %1606 = vmatprep.subr.mxu0 0.0
        %v1607 = vand.u32 %v355, 4294901760
        %1608 = vmatpush1.msra.mxu0 %v1607
        %1609 = vmatprep.subr.mxu0 0.0
        %v1610 = vand.u32 %v356, 4294901760
        %1611 = vmatpush1.msra.mxu0 %v1610
        %1612 = vmatprep.subr.mxu0 0.0
        %v1613 = vand.u32 %v357, 4294901760
        %1614 = vmatpush1.msra.mxu0 %v1613
        %1615 = vmatprep.subr.mxu0 0.0
        %1616 = vmatpush1.msra.mxu0 0.0
        %1617 = vmatprep.subr.mxu0 0.0
        %1618 = vmatpush1.msra.mxu0 0.0
        %1619 = vmatprep.subr.mxu0 0.0
        %1620 = vmatpush1.msra.mxu0 0.0
        %1621 = vmatprep.subr.mxu0 0.0
        %1622 = vmatpush1.msra.mxu0 0.0
        %1623 = vmatprep.subr.mxu0 0.0
        %1624 = vmatpush1.msra.mxu0 0.0
        %1625 = vmatprep.subr.mxu0 0.0
        %1626 = vmatpush1.msra.mxu0 0.0
        %1627 = vmatprep.subr.mxu0 0.0
        %1628 = vmatpush1.msra.mxu0 0.0
        %1629 = vmatprep.subr.mxu0 0.0
        %1630 = vmatpush1.msra.mxu0 0.0
        %1631 = vmatprep.subr.mxu0 0.0
        %1632 = vmatpush1.msra.mxu0 0.0
        %1633 = vmatprep.subr.mxu0 0.0
        %1634 = vmatpush1.msra.mxu0 0.0
        %1635 = vmatprep.subr.mxu0 0.0
        %1636 = vmatpush1.msra.mxu0 0.0
        %1637 = vmatprep.subr.mxu0 0.0
        %1638 = vmatpush1.msra.mxu0 0.0
        %1639 = vmatprep.subr.mxu0 0.0
        %1640 = vmatpush1.msra.mxu0 0.0
        %1641 = vmatprep.subr.mxu0 0.0
        %1642 = vmatpush1.msra.mxu0 0.0
        %1643 = vmatprep.subr.mxu0 0.0
        %1644 = vmatpush1.msra.mxu0 0.0
        %1645 = vmatprep.subr.mxu0 0.0
        %1646 = vmatpush1.msra.mxu0 0.0
        %1647 = vmatprep.mubr.f32.mxu0 0.0
        %v1648 = vand.u32 %v325, 4294901760
        %1649 = vmatmul.mubr.f32.gmra.mrb[0].mxu0 %v1648
        %v1650 = vpop.f32.mrb[0].mxu0
        %v1651 = vadd.f32 %v1564, %v1650
        %v1652 = vpop.f32.mrb[0].mxu0
        %1653 = vdwg.mxu0
        %v1654 = vmul.f32 %v1651, 0.5
        %v1655 = vmul.f32 %v1651, 0.70710677
        %v1656 = verf.f32.pop %v1655
        %v1657 = vadd.f32 %v1656, 1.0
        %v1658 = vmul.f32 %v1654, %v1657
        %v1659 = vmul.f32 %v1003, %v1658
        %1660 = vst [vmem:[%s318] sm:$0xff] %v1659
        %s1661 = sand.u32 %s175, 1
        %s1662 = scalar_lea.sflag [#allocation4], %s1661
        %s1663 = sand.u32 %s175, 1
        %s1664 = smul.addr %s1663, 8
        %s1665 = scalar_lea.vmem [#allocation8], %s1664
        // Predicated region
        $region53: #{tpu_custom_call.1} parent=39 // pred_check
          %p1666 = pneg %p185
        $region54: #{tpu_custom_call.1} parent=39 // pred_check_branch
          %1668 = sbr.rel (%p1666) target = $region56
        $region55: #{tpu_custom_call.1} parent=39 // pred_region
          %s1670 = ssub.s32 128, 128
          %1671 = vsyncadd %s1662, %s1670
          %s1672 = sadd.s32 %s28, %s27
          %s1673 = smul.addr %s1672, 128
          %s1674 = scalar_lea.hbm %s5, %s1673
          %s1676 = sshll.u32 %s1665, 4
          %s1677 = int_to_ptr.vmem [resolvable:$true] %s1676
          %1679 = dma.vmem_to_hbm [thread:$0]  %s1677, 128, %s1674, %s1662
        $region56: #{tpu_custom_call.1} parent=39 // pred_fallthru
          _
      $region40: #{tpu_custom_call.1} parent=5 // pred_fallthru
        _
      %p1680 = scmp.le.s32.totalorder 2, %s18
      // Predicated region
      $region57: #{tpu_custom_call.1} parent=5 // pred_check
        %p1681 = pneg %p1680
      $region58: #{tpu_custom_call.1} parent=5 // pred_check_branch
        %1683 = sbr.rel (%p1681) target = $region60
      $region59: #{tpu_custom_call.1} parent=5 // pred_region
        %s1684 = ssub.s32 %s18, 2
        // Predicated region
        $region61: #{tpu_custom_call.1} parent=59 // pred_check
          %p1685 = pneg %p191
        $region62: #{tpu_custom_call.1} parent=59 // pred_check_branch
          %1687 = sbr.rel (%p1685) target = $region64
        $region63: #{tpu_custom_call.1} parent=59 // pred_region
          %s1688 = sand.u32 %s176, 1
          %s1689 = scalar_lea.sflag [#allocation4], %s1688
          %s1690 = sand.u32 %s176, 1
          %s1691 = smul.addr %s1690, 8
          %s1692 = scalar_lea.vmem [#allocation8], %s1691
          %1693 = dma.done %s1689, 128
        $region64: #{tpu_custom_call.1} parent=59 // pred_fallthru
          _
      $region60: #{tpu_custom_call.1} parent=5 // pred_fallthru
        _
    $region6: #{tpu_custom_call.1} parent=1 // loop_footer
      %s22 = sadd.s32 1, %s18
    $region7: #{tpu_custom_call.1} parent=1 // loop_footer_branch
      %17 = sbr.rel target = $region3
    $region8: #{tpu_custom_call.1} parent=1 // loop_exit
      _
    %1694 = vsyncpa [#allocation3], 1
    %s1695 = scalar_lea.sflag [#allocation3], 1
    %1696 = vsyncpa %s1695, 1
    %1697 = vsyncpa [#allocation6], 1
    %1698 = vsyncpa [#allocation4], 1
    %s1699 = scalar_lea.sflag [#allocation4], 1
    %1700 = vsyncpa %s1699, 1

</llo_original>
